<compile_context>
chip_gen: v5e
topology: v5e:2x2
jax: 0.10.0
libtpu: 0.0.40
codegen_flags: <defaults>
</compile_context>

<pallas_src>
import jax
import jax.numpy as jnp
from jax.experimental import pallas as pl
from jax.experimental.pallas import tpu as pltpu

EPS = 1e-6  # matches nn.LayerNorm(..., eps=1e-06) in the PyTorch module


def _round_up(v, m):
    return (v + m - 1) // m * m


def _patch_embed_kernel(x_ref, w_ref, b_ref, g_ref, beta_ref, o_ref):
    # x_ref:    (1, K_pad, bb*N)  packed patches for bb samples (MXU dtype)
    # w_ref:    (E, K_pad)        conv weight (MXU dtype)
    # b_ref:    (E, 1)            conv bias   (f32, pre-cast in wrapper)
    # g_ref:    (E, N)            LN gamma    (f32)
    # beta_ref: (E, N)            LN beta     (f32)
    # o_ref:    (bb, E, N)        output, already in the PyTorch (E, gh*gw) layout
    bb, E, N = o_ref.shape
    inv_n = 1.0 / (E * N)     # LayerNorm normalizes over all E*gh*gw elements

    # One wide MXU matmul for all bb samples of this block: (E,K) @ (K, bb*N),
    # f32 accumulator for LN numerics.  Zero-padded K rows contribute nothing.
    y = jnp.dot(w_ref[...], x_ref[0], preferred_element_type=jnp.float32)
    y = y + b_ref[...]                               # (E, bb*N) + (E, 1)

    g = g_ref[...]
    beta = beta_ref[...]
    for s in range(bb):                              # bb is small (<= 8): static unroll
        ys = y[:, s * N:(s + 1) * N]                 # (E, N) static lane slice
        mean = jnp.sum(ys) * inv_n                   # one-pass stats (XLU reduces)
        mean_sq = jnp.sum(ys * ys) * inv_n
        # Clamp: one-pass variance can go slightly negative under cancellation.
        var = jnp.maximum(mean_sq - mean * mean, 0.0)
        inv = jax.lax.rsqrt(var + EPS)
        o_ref[s] = ((ys - mean) * inv * g + beta).astype(o_ref.dtype)


def _vmem_limit_bytes():
    """Generation-aware VMEM limit (~70% of physical); conservative fallback."""
    try:
        cap = int(pltpu.get_tpu_info().vmem_capacity_bytes)
    except Exception:
        cap = 64 << 20        # assume v7x-class (64 MiB) when the query fails
    return int(cap * 0.7)


def _pick_block_batch(B, N, K_pad, E, in_bytes, out_bytes, budget_bytes):
    """Largest divisor of B (capped at 8 samples/step) whose per-step VMEM
    footprint fits, preferring >= 4 (and even) grid steps so v7x's two
    TensorCores each get >= 2 overlapped steps."""
    def tile(r, c, nbytes):   # (8,128)-padded VMEM footprint of a 2-D tile
        return _round_up(r, 8) * _round_up(c, 128) * nbytes

    # Constant-index operands; assume double buffers (worst case if Buffered(1)
    # is unavailable).  Bias (E,1) is lane-padded to (E,128) in VMEM.
    const = 2 * (tile(E, K_pad, in_bytes) + tile(E, 1, 4) + 2 * tile(E, N, 4))

    def fits(bb):
        per_step = (2 * tile(K_pad, bb * N, in_bytes)        # input block
                    + 2 * bb * tile(E, N, out_bytes))        # output block
        return const + per_step <= budget_bytes

    divs = [d for d in range(1, min(B, 8) + 1) if B % d == 0 and fits(d)] or [1]
    for min_steps in (4, 2, 1):
        cands = [d for d in divs if B // d >= min_steps]
        if cands:
            even = [d for d in cands if (B // d) % 2 == 0]
            return max(even) if even else max(cands)
    return 1


def patch_embed_forward(x, conv_w, conv_b, ln_w, ln_b, patch_size,
                        matmul_dtype=jnp.bfloat16, out_dtype=None,
                        block_batch=None):
    """x: (B, C, H, W) NCHW. conv_w: (E, C, ph, pw). conv_b: (E,).
    ln_w, ln_b: (E, gh, gw). Returns (B, E, gh, gw) like the PyTorch module.
    matmul_dtype: dtype of the MXU operands (default bf16); accumulation and
    LayerNorm are always f32.  out_dtype: output dtype (default: x.dtype)."""
    B, C, H, W = x.shape
    E = conv_w.shape[0]
    ph, pw = patch_size
    assert H % ph == 0 and W % pw == 0, (H, W, patch_size)
    gh, gw = H // ph, W // pw
    N = gh * gw
    K = C * ph * pw
    if matmul_dtype is None:
        matmul_dtype = x.dtype
    out_dtype = out_dtype or x.dtype
    in_bytes = jnp.dtype(matmul_dtype).itemsize
    out_bytes = jnp.dtype(out_dtype).itemsize

    # Pad the contraction dim to the sublane pack of the MXU dtype (8 f32 / 16 bf16).
    sub_pack = max(1, 32 // (8 * in_bytes)) * 8
    K_pad = _round_up(K, sub_pack)

    vmem_limit = _vmem_limit_bytes()
    if block_batch is None:
        block_batch = _pick_block_batch(B, N, K_pad, E, in_bytes, out_bytes,
                                        budget_bytes=int(vmem_limit * 0.75))
    bb = block_batch
    assert B % bb == 0, (B, bb)
    nb = B // bb

    # --- glue: cast FIRST (bf16 halves the transpose's HBM traffic), then pack
    # patches as (nb, K, bb*N).  This single transpose is the only XLA layout op;
    # the output side needs no transpose at all (pure reshape).
    # TODO(synk): fuse the patch extraction into the kernel (manual DMA over x)
    # to remove this HBM round trip entirely; call under jit so cast+transpose fuse.
    xq = x.astype(matmul_dtype)
    p = xq.reshape(nb, bb, C, gh, ph, gw, pw).transpose(0, 2, 4, 6, 1, 3, 5)
    patches = p.reshape(nb, K, bb * N)                    # (nb, K, bb*N)
    w_mat = conv_w.reshape(E, K).astype(matmul_dtype)     # (E, K), no transpose
    if K_pad != K:                                        # zero-pad: exact for matmul
        patches = jnp.pad(patches, ((0, 0), (0, K_pad - K), (0, 0)))
        w_mat = jnp.pad(w_mat, ((0, 0), (0, K_pad - K)))

    b_vec = conv_b.reshape(E, 1).astype(jnp.float32)      # pre-cast: no in-kernel casts
    gamma = ln_w.reshape(E, N).astype(jnp.float32)        # (E, gh, gw) -> (E, N), free
    beta = ln_b.reshape(E, N).astype(jnp.float32)

    def build(const_mode):
        const_kw = {} if const_mode is None else {"pipeline_mode": const_mode}
        return pl.pallas_call(
            _patch_embed_kernel,
            out_shape=jax.ShapeDtypeStruct((B, E, N), out_dtype),
            grid_spec=pltpu.PrefetchScalarGridSpec(
                num_scalar_prefetch=0,
                grid=(nb,),
                in_specs=[
                    pl.BlockSpec((1, K_pad, bb * N), lambda i: (i, 0, 0)),   # patches
                    # Constant-index operands are DMA'd once; single-buffer them
                    # when the runtime supports pl.Buffered(1) (v7x VMEM relief).
                    pl.BlockSpec((E, K_pad), lambda i: (0, 0), **const_kw),  # weight
                    pl.BlockSpec((E, 1), lambda i: (0, 0), **const_kw),      # bias
                    pl.BlockSpec((E, N), lambda i: (0, 0), **const_kw),      # gamma
                    pl.BlockSpec((E, N), lambda i: (0, 0), **const_kw),      # beta
                ],
                out_specs=pl.BlockSpec((bb, E, N), lambda i: (i, 0, 0)),
            ),
            compiler_params=pltpu.CompilerParams(
                dimension_semantics=("parallel",),
                vmem_limit_bytes=vmem_limit,
            ),
        )

    try:
        out = build(pl.Buffered(1))(patches, w_mat, b_vec, gamma, beta)
    except Exception:
        # Fallback: default (double) buffering for the constant operands.
        out = build(None)(patches, w_mat, b_vec, gamma, beta)

    # (B, E, N) -> (B, E, gh, gw): pure reshape, no XLA transpose.
    return out.reshape(B, E, gh, gw)


def _reference(x, conv_w, conv_b, ln_w, ln_b, patch_size):
    """Pure-JAX reference matching the PyTorch module."""
    E = conv_w.shape[0]
    ph, pw = patch_size
    y = jax.lax.conv_general_dilated(
        x.astype(jnp.float32), conv_w.astype(jnp.float32),
        window_strides=(ph, pw), padding="VALID",
        dimension_numbers=("NCHW", "OIHW", "NCHW"))
    y = y + conv_b.reshape(1, E, 1, 1)
    mean = jnp.mean(y, axis=(1, 2, 3), keepdims=True)
    var = jnp.mean((y - mean) ** 2, axis=(1, 2, 3), keepdims=True)
    yn = (y - mean) * jax.lax.rsqrt(var + EPS)
    return yn * ln_w[None] + ln_b[None]


if __name__ == "__main__":
    # Small shapes: img 16x16, patch 2x2, 4 input channels, embed_dim 32, batch 8
    # (batch 8 -> default picker chooses block_batch=2, exercising the wide-matmul path).
    B, C, H, W = 8, 4, 16, 16
    patch_size = (2, 2)
    E = 32
    ph, pw = patch_size
    gh, gw = H // ph, W // pw

    key = jax.random.PRNGKey(0)
    kx, kw, kb, kg, kbe = jax.random.split(key, 5)
    x = jax.random.normal(kx, (B, C, H, W), dtype=jnp.float32)
    conv_w = jax.random.normal(kw, (E, C, ph, pw), dtype=jnp.float32) * 0.05
    conv_b = jax.random.normal(kb, (E,), dtype=jnp.float32) * 0.05
    ln_w = jnp.ones((E, gh, gw), dtype=jnp.float32) + \
        0.01 * jax.random.normal(kg, (E, gh, gw), dtype=jnp.float32)
    ln_b = 0.01 * jax.random.normal(kbe, (E, gh, gw), dtype=jnp.float32)

    ref = _reference(x, conv_w, conv_b, ln_w, ln_b, patch_size)

    # Default path: bf16 MXU operands, f32 accumulation & LayerNorm.
    out = patch_embed_forward(x, conv_w, conv_b, ln_w, ln_b, patch_size)
    out = jax.block_until_ready(out)
    assert out.shape == (B, E, gh, gw), out.shape
    assert jnp.allclose(out, ref, atol=5e-2, rtol=5e-2), \
        float(jnp.max(jnp.abs(out - ref)))

    # f32 MXU path: tight check against the f32 reference.
    out_f32 = patch_embed_forward(x, conv_w, conv_b, ln_w, ln_b, patch_size,
                                  matmul_dtype=jnp.float32)
    out_f32 = jax.block_until_ready(out_f32)
    assert out_f32.shape == (B, E, gh, gw), out_f32.shape
    assert jnp.allclose(out_f32, ref, atol=1e-4, rtol=1e-4), \
        float(jnp.max(jnp.abs(out_f32 - ref)))

    # Explicit block_batch=1 (single-sample blocks) still matches.
    out_bb1 = patch_embed_forward(x, conv_w, conv_b, ln_w, ln_b, patch_size,
                                  matmul_dtype=jnp.float32, block_batch=1)
    out_bb1 = jax.block_until_ready(out_bb1)
    assert jnp.allclose(out_bb1, ref, atol=1e-4, rtol=1e-4), \
        float(jnp.max(jnp.abs(out_bb1 - ref)))

    print("KERNEL_OK")
</pallas_src>

<mosaic_0001>
module attributes {stable_mosaic.version = 11 : i64} {
  func.func @_patch_embed_kernel(%arg0: i32, %arg1: memref<1x16x128xbf16, #tpu.memory_space<vmem>>, %arg2: memref<32x16xbf16, #tpu.memory_space<vmem>>, %arg3: memref<32x1xf32, #tpu.memory_space<vmem>>, %arg4: memref<32x64xf32, #tpu.memory_space<vmem>>, %arg5: memref<32x64xf32, #tpu.memory_space<vmem>>, %arg6: memref<2x32x64xf32, #tpu.memory_space<vmem>>) attributes {dimension_semantics = [#tpu.dimension_semantics<parallel>], iteration_bounds = array<i64: 4>, scalar_prefetch = 0 : i64, scratch_operands = 0 : i64, tpu.core_type = #tpu.core_type<tc>, window_params = [{transform_indices = @transform_0, window_bounds = array<i64: 1, 16, 128>}, {pipeline_mode = #tpu.pipeline_mode<synchronous>, transform_indices = @transform_1, window_bounds = array<i64: 32, 16>}, {pipeline_mode = #tpu.pipeline_mode<synchronous>, transform_indices = @transform_2, window_bounds = array<i64: 32, 1>}, {pipeline_mode = #tpu.pipeline_mode<synchronous>, transform_indices = @transform_3, window_bounds = array<i64: 32, 64>}, {pipeline_mode = #tpu.pipeline_mode<synchronous>, transform_indices = @transform_4, window_bounds = array<i64: 32, 64>}, {transform_indices = @transform_5, window_bounds = array<i64: 2, 32, 64>}]} {
    %c0 = arith.constant 0 : index
    %c0_0 = arith.constant 0 : index
    %0 = vector.load %arg2[%c0, %c0_0] : memref<32x16xbf16, #tpu.memory_space<vmem>>, vector<32x16xbf16>
    %c0_1 = arith.constant 0 : index
    %c0_2 = arith.constant 0 : index
    %c0_3 = arith.constant 0 : index
    %1 = vector.load %arg1[%c0_1, %c0_2, %c0_3] : memref<1x16x128xbf16, #tpu.memory_space<vmem>>, vector<1x16x128xbf16>
    %2 = vector.shape_cast %1 : vector<1x16x128xbf16> to vector<16x128xbf16>
    %cst = arith.constant dense<0.000000e+00> : vector<32x128xf32>
    %3 = tpu.matmul %0, %2, %cst {dimension_numbers = #tpu.dot_dimension_numbers<[1], [0], [0], [1], [0, 0, 1, 1], [], []>} : vector<32x16xbf16>, vector<16x128xbf16>, vector<32x128xf32> -> vector<32x128xf32>
    %c0_4 = arith.constant 0 : index
    %c0_5 = arith.constant 0 : index
    %4 = vector.load %arg3[%c0_4, %c0_5] : memref<32x1xf32, #tpu.memory_space<vmem>>, vector<32x1xf32>
    %5 = vector.broadcast %4 : vector<32x1xf32> to vector<32x128xf32>
    %6 = arith.addf %3, %5 : vector<32x128xf32>
    %c0_6 = arith.constant 0 : index
    %c0_7 = arith.constant 0 : index
    %7 = vector.load %arg4[%c0_6, %c0_7] : memref<32x64xf32, #tpu.memory_space<vmem>>, vector<32x64xf32>
    %c0_8 = arith.constant 0 : index
    %c0_9 = arith.constant 0 : index
    %8 = vector.load %arg5[%c0_8, %c0_9] : memref<32x64xf32, #tpu.memory_space<vmem>>, vector<32x64xf32>
    %9 = vector.extract_strided_slice %6 {offsets = [0, 0], sizes = [32, 64], strides = [1, 1]} : vector<32x128xf32> to vector<32x64xf32>
    %10 = vector.shape_cast %9 : vector<32x64xf32> to vector<1x32x64xf32>
    %cst_10 = arith.constant dense<0.000000e+00> : vector<1xf32>
    %11 = vector.multi_reduction <add>, %10, %cst_10 [1, 2] : vector<1x32x64xf32> to vector<1xf32>
    %12 = vector.shape_cast %11 : vector<1xf32> to vector<1x1x1xf32>
    %13 = vector.extract %12[0, 0, 0] : f32 from vector<1x1x1xf32>
    %cst_11 = arith.constant 4.8828125E-4 : f32
    %14 = arith.mulf %13, %cst_11 : f32
    %15 = arith.mulf %9, %9 : vector<32x64xf32>
    %16 = vector.shape_cast %15 : vector<32x64xf32> to vector<1x32x64xf32>
    %cst_12 = arith.constant dense<0.000000e+00> : vector<1xf32>
    %17 = vector.multi_reduction <add>, %16, %cst_12 [1, 2] : vector<1x32x64xf32> to vector<1xf32>
    %18 = vector.shape_cast %17 : vector<1xf32> to vector<1x1x1xf32>
    %19 = vector.extract %18[0, 0, 0] : f32 from vector<1x1x1xf32>
    %cst_13 = arith.constant 4.8828125E-4 : f32
    %20 = arith.mulf %19, %cst_13 : f32
    %21 = arith.mulf %14, %14 : f32
    %22 = arith.subf %20, %21 : f32
    %cst_14 = arith.constant 0.000000e+00 : f32
    %23 = arith.maximumf %22, %cst_14 : f32
    %cst_15 = arith.constant 9.99999997E-7 : f32
    %24 = arith.addf %23, %cst_15 : f32
    %25 = math.rsqrt %24 : f32
    %26 = vector.broadcast %14 : f32 to vector<32x64xf32>
    %27 = arith.subf %9, %26 : vector<32x64xf32>
    %28 = vector.broadcast %25 : f32 to vector<32x64xf32>
    %29 = arith.mulf %27, %28 : vector<32x64xf32>
    %30 = arith.mulf %29, %7 : vector<32x64xf32>
    %31 = arith.addf %30, %8 : vector<32x64xf32>
    %c0_16 = arith.constant 0 : index
    %c0_17 = arith.constant 0 : index
    %c0_18 = arith.constant 0 : index
    %32 = vector.load %arg6[%c0_16, %c0_17, %c0_18] : memref<2x32x64xf32, #tpu.memory_space<vmem>>, vector<1x32x64xf32>
    %33 = vector.shape_cast %32 : vector<1x32x64xf32> to vector<32x64xf32>
    %34 = vector.shape_cast %31 : vector<32x64xf32> to vector<1x32x64xf32>
    tpu.vector_store %arg6[%c0_16, %c0_17, %c0_18], %34 {strides = array<i32>} : memref<2x32x64xf32, #tpu.memory_space<vmem>>, vector<1x32x64xf32>,
    %35 = vector.extract_strided_slice %6 {offsets = [0, 64], sizes = [32, 64], strides = [1, 1]} : vector<32x128xf32> to vector<32x64xf32>
    %36 = vector.shape_cast %35 : vector<32x64xf32> to vector<1x32x64xf32>
    %cst_19 = arith.constant dense<0.000000e+00> : vector<1xf32>
    %37 = vector.multi_reduction <add>, %36, %cst_19 [1, 2] : vector<1x32x64xf32> to vector<1xf32>
    %38 = vector.shape_cast %37 : vector<1xf32> to vector<1x1x1xf32>
    %39 = vector.extract %38[0, 0, 0] : f32 from vector<1x1x1xf32>
    %cst_20 = arith.constant 4.8828125E-4 : f32
    %40 = arith.mulf %39, %cst_20 : f32
    %41 = arith.mulf %35, %35 : vector<32x64xf32>
    %42 = vector.shape_cast %41 : vector<32x64xf32> to vector<1x32x64xf32>
    %cst_21 = arith.constant dense<0.000000e+00> : vector<1xf32>
    %43 = vector.multi_reduction <add>, %42, %cst_21 [1, 2] : vector<1x32x64xf32> to vector<1xf32>
    %44 = vector.shape_cast %43 : vector<1xf32> to vector<1x1x1xf32>
    %45 = vector.extract %44[0, 0, 0] : f32 from vector<1x1x1xf32>
    %cst_22 = arith.constant 4.8828125E-4 : f32
    %46 = arith.mulf %45, %cst_22 : f32
    %47 = arith.mulf %40, %40 : f32
    %48 = arith.subf %46, %47 : f32
    %cst_23 = arith.constant 0.000000e+00 : f32
    %49 = arith.maximumf %48, %cst_23 : f32
    %cst_24 = arith.constant 9.99999997E-7 : f32
    %50 = arith.addf %49, %cst_24 : f32
    %51 = math.rsqrt %50 : f32
    %52 = vector.broadcast %40 : f32 to vector<32x64xf32>
    %53 = arith.subf %35, %52 : vector<32x64xf32>
    %54 = vector.broadcast %51 : f32 to vector<32x64xf32>
    %55 = arith.mulf %53, %54 : vector<32x64xf32>
    %56 = arith.mulf %55, %7 : vector<32x64xf32>
    %57 = arith.addf %56, %8 : vector<32x64xf32>
    %c1 = arith.constant 1 : index
    %c0_25 = arith.constant 0 : index
    %c0_26 = arith.constant 0 : index
    %58 = vector.load %arg6[%c1, %c0_25, %c0_26] : memref<2x32x64xf32, #tpu.memory_space<vmem>>, vector<1x32x64xf32>
    %59 = vector.shape_cast %58 : vector<1x32x64xf32> to vector<32x64xf32>
    %60 = vector.shape_cast %57 : vector<32x64xf32> to vector<1x32x64xf32>
    tpu.vector_store %arg6[%c1, %c0_25, %c0_26], %60 {strides = array<i32>} : memref<2x32x64xf32, #tpu.memory_space<vmem>>, vector<1x32x64xf32>,
    return
  }
  func.func @transform_0(%arg0: i32) -> (i32, i32, i32) {
    %c0_i32 = arith.constant 0 : i32
    %c0_i32_0 = arith.constant 0 : i32
    %c0_i32_1 = arith.constant 0 : i32
    return %arg0, %c0_i32, %c0_i32_0 : i32, i32, i32
  }
  func.func @transform_1(%arg0: i32) -> (i32, i32) {
    %c0_i32 = arith.constant 0 : i32
    %c0_i32_0 = arith.constant 0 : i32
    %c0_i32_1 = arith.constant 0 : i32
    return %c0_i32, %c0_i32_0 : i32, i32
  }
  func.func @transform_2(%arg0: i32) -> (i32, i32) {
    %c0_i32 = arith.constant 0 : i32
    %c0_i32_0 = arith.constant 0 : i32
    %c0_i32_1 = arith.constant 0 : i32
    return %c0_i32, %c0_i32_0 : i32, i32
  }
  func.func @transform_3(%arg0: i32) -> (i32, i32) {
    %c0_i32 = arith.constant 0 : i32
    %c0_i32_0 = arith.constant 0 : i32
    %c0_i32_1 = arith.constant 0 : i32
    return %c0_i32, %c0_i32_0 : i32, i32
  }
  func.func @transform_4(%arg0: i32) -> (i32, i32) {
    %c0_i32 = arith.constant 0 : i32
    %c0_i32_0 = arith.constant 0 : i32
    %c0_i32_1 = arith.constant 0 : i32
    return %c0_i32, %c0_i32_0 : i32, i32
  }
  func.func @transform_5(%arg0: i32) -> (i32, i32, i32) {
    %c0_i32 = arith.constant 0 : i32
    %c0_i32_0 = arith.constant 0 : i32
    %c0_i32_1 = arith.constant 0 : i32
    return %arg0, %c0_i32, %c0_i32_0 : i32, i32, i32
  }
}

module attributes {stable_mosaic.version = 11 : i64} {
  func.func @_patch_embed_kernel(%arg0: i32, %arg1: memref<1x16x128xbf16, #tpu.memory_space<vmem>>, %arg2: memref<32x16xbf16, #tpu.memory_space<vmem>>, %arg3: memref<32x1xf32, #tpu.memory_space<vmem>>, %arg4: memref<32x64xf32, #tpu.memory_space<vmem>>, %arg5: memref<32x64xf32, #tpu.memory_space<vmem>>, %arg6: memref<2x32x64xf32, #tpu.memory_space<vmem>>) attributes {dimension_semantics = [#tpu.dimension_semantics<parallel>], iteration_bounds = array<i64: 4>, scalar_prefetch = 0 : i64, scratch_operands = 0 : i64, tpu.core_type = #tpu.core_type<tc>, window_params = [{transform_indices = @transform_0, window_bounds = array<i64: 1, 16, 128>}, {pipeline_mode = #tpu.pipeline_mode<synchronous>, transform_indices = @transform_1, window_bounds = array<i64: 32, 16>}, {pipeline_mode = #tpu.pipeline_mode<synchronous>, transform_indices = @transform_2, window_bounds = array<i64: 32, 1>}, {pipeline_mode = #tpu.pipeline_mode<synchronous>, transform_indices = @transform_3, window_bounds = array<i64: 32, 64>}, {pipeline_mode = #tpu.pipeline_mode<synchronous>, transform_indices = @transform_4, window_bounds = array<i64: 32, 64>}, {transform_indices = @transform_5, window_bounds = array<i64: 2, 32, 64>}]} {
    %c0 = arith.constant 0 : index
    %c0_0 = arith.constant 0 : index
    %0 = vector.load %arg2[%c0, %c0_0] : memref<32x16xbf16, #tpu.memory_space<vmem>>, vector<32x16xbf16>
    %c0_1 = arith.constant 0 : index
    %c0_2 = arith.constant 0 : index
    %c0_3 = arith.constant 0 : index
    %1 = vector.load %arg1[%c0_1, %c0_2, %c0_3] : memref<1x16x128xbf16, #tpu.memory_space<vmem>>, vector<1x16x128xbf16>
    %2 = vector.shape_cast %1 : vector<1x16x128xbf16> to vector<16x128xbf16>
    %cst = arith.constant dense<0.000000e+00> : vector<32x128xf32>
    %3 = tpu.matmul %0, %2, %cst {dimension_numbers = #tpu.dot_dimension_numbers<[1], [0], [0], [1], [0, 0, 1, 1], [], []>} : vector<32x16xbf16>, vector<16x128xbf16>, vector<32x128xf32> -> vector<32x128xf32>
    %c0_4 = arith.constant 0 : index
    %c0_5 = arith.constant 0 : index
    %4 = vector.load %arg3[%c0_4, %c0_5] : memref<32x1xf32, #tpu.memory_space<vmem>>, vector<32x1xf32>
    %5 = vector.broadcast %4 : vector<32x1xf32> to vector<32x128xf32>
    %6 = arith.addf %3, %5 : vector<32x128xf32>
    %c0_6 = arith.constant 0 : index
    %c0_7 = arith.constant 0 : index
    %7 = vector.load %arg4[%c0_6, %c0_7] : memref<32x64xf32, #tpu.memory_space<vmem>>, vector<32x64xf32>
    %c0_8 = arith.constant 0 : index
    %c0_9 = arith.constant 0 : index
    %8 = vector.load %arg5[%c0_8, %c0_9] : memref<32x64xf32, #tpu.memory_space<vmem>>, vector<32x64xf32>
    %9 = vector.extract_strided_slice %6 {offsets = [0, 0], sizes = [32, 64], strides = [1, 1]} : vector<32x128xf32> to vector<32x64xf32>
    %10 = vector.shape_cast %9 : vector<32x64xf32> to vector<1x32x64xf32>
    %cst_10 = arith.constant dense<0.000000e+00> : vector<1xf32>
    %11 = vector.multi_reduction <add>, %10, %cst_10 [1, 2] : vector<1x32x64xf32> to vector<1xf32>
    %12 = vector.shape_cast %11 : vector<1xf32> to vector<1x1x1xf32>
    %13 = vector.extract %12[0, 0, 0] : f32 from vector<1x1x1xf32>
    %cst_11 = arith.constant 4.8828125E-4 : f32
    %14 = arith.mulf %13, %cst_11 : f32
    %15 = arith.mulf %9, %9 : vector<32x64xf32>
    %16 = vector.shape_cast %15 : vector<32x64xf32> to vector<1x32x64xf32>
    %cst_12 = arith.constant dense<0.000000e+00> : vector<1xf32>
    %17 = vector.multi_reduction <add>, %16, %cst_12 [1, 2] : vector<1x32x64xf32> to vector<1xf32>
    %18 = vector.shape_cast %17 : vector<1xf32> to vector<1x1x1xf32>
    %19 = vector.extract %18[0, 0, 0] : f32 from vector<1x1x1xf32>
    %cst_13 = arith.constant 4.8828125E-4 : f32
    %20 = arith.mulf %19, %cst_13 : f32
    %21 = arith.mulf %14, %14 : f32
    %22 = arith.subf %20, %21 : f32
    %cst_14 = arith.constant 0.000000e+00 : f32
    %23 = arith.maximumf %22, %cst_14 : f32
    %cst_15 = arith.constant 9.99999997E-7 : f32
    %24 = arith.addf %23, %cst_15 : f32
    %25 = math.rsqrt %24 : f32
    %26 = vector.broadcast %14 : f32 to vector<32x64xf32>
    %27 = arith.subf %9, %26 : vector<32x64xf32>
    %28 = vector.broadcast %25 : f32 to vector<32x64xf32>
    %29 = arith.mulf %27, %28 : vector<32x64xf32>
    %30 = arith.mulf %29, %7 : vector<32x64xf32>
    %31 = arith.addf %30, %8 : vector<32x64xf32>
    %c0_16 = arith.constant 0 : index
    %c0_17 = arith.constant 0 : index
    %c0_18 = arith.constant 0 : index
    %32 = vector.load %arg6[%c0_16, %c0_17, %c0_18] : memref<2x32x64xf32, #tpu.memory_space<vmem>>, vector<1x32x64xf32>
    %33 = vector.shape_cast %32 : vector<1x32x64xf32> to vector<32x64xf32>
    %34 = vector.shape_cast %31 : vector<32x64xf32> to vector<1x32x64xf32>
    tpu.vector_store %arg6[%c0_16, %c0_17, %c0_18], %34 {strides = array<i32>} : memref<2x32x64xf32, #tpu.memory_space<vmem>>, vector<1x32x64xf32>,
    %35 = vector.extract_strided_slice %6 {offsets = [0, 64], sizes = [32, 64], strides = [1, 1]} : vector<32x128xf32> to vector<32x64xf32>
    %36 = vector.shape_cast %35 : vector<32x64xf32> to vector<1x32x64xf32>
    %cst_19 = arith.constant dense<0.000000e+00> : vector<1xf32>
    %37 = vector.multi_reduction <add>, %36, %cst_19 [1, 2] : vector<1x32x64xf32> to vector<1xf32>
    %38 = vector.shape_cast %37 : vector<1xf32> to vector<1x1x1xf32>
    %39 = vector.extract %38[0, 0, 0] : f32 from vector<1x1x1xf32>
    %cst_20 = arith.constant 4.8828125E-4 : f32
    %40 = arith.mulf %39, %cst_20 : f32
    %41 = arith.mulf %35, %35 : vector<32x64xf32>
    %42 = vector.shape_cast %41 : vector<32x64xf32> to vector<1x32x64xf32>
    %cst_21 = arith.constant dense<0.000000e+00> : vector<1xf32>
    %43 = vector.multi_reduction <add>, %42, %cst_21 [1, 2] : vector<1x32x64xf32> to vector<1xf32>
    %44 = vector.shape_cast %43 : vector<1xf32> to vector<1x1x1xf32>
    %45 = vector.extract %44[0, 0, 0] : f32 from vector<1x1x1xf32>
    %cst_22 = arith.constant 4.8828125E-4 : f32
    %46 = arith.mulf %45, %cst_22 : f32
    %47 = arith.mulf %40, %40 : f32
    %48 = arith.subf %46, %47 : f32
    %cst_23 = arith.constant 0.000000e+00 : f32
    %49 = arith.maximumf %48, %cst_23 : f32
    %cst_24 = arith.constant 9.99999997E-7 : f32
    %50 = arith.addf %49, %cst_24 : f32
    %51 = math.rsqrt %50 : f32
    %52 = vector.broadcast %40 : f32 to vector<32x64xf32>
    %53 = arith.subf %35, %52 : vector<32x64xf32>
    %54 = vector.broadcast %51 : f32 to vector<32x64xf32>
    %55 = arith.mulf %53, %54 : vector<32x64xf32>
    %56 = arith.mulf %55, %7 : vector<32x64xf32>
    %57 = arith.addf %56, %8 : vector<32x64xf32>
    %c1 = arith.constant 1 : index
    %c0_25 = arith.constant 0 : index
    %c0_26 = arith.constant 0 : index
    %58 = vector.load %arg6[%c1, %c0_25, %c0_26] : memref<2x32x64xf32, #tpu.memory_space<vmem>>, vector<1x32x64xf32>
    %59 = vector.shape_cast %58 : vector<1x32x64xf32> to vector<32x64xf32>
    %60 = vector.shape_cast %57 : vector<32x64xf32> to vector<1x32x64xf32>
    tpu.vector_store %arg6[%c1, %c0_25, %c0_26], %60 {strides = array<i32>} : memref<2x32x64xf32, #tpu.memory_space<vmem>>, vector<1x32x64xf32>,
    return
  }
  func.func @transform_0(%arg0: i32) -> (i32, i32, i32) {
    %c0_i32 = arith.constant 0 : i32
    %c0_i32_0 = arith.constant 0 : i32
    %c0_i32_1 = arith.constant 0 : i32
    return %arg0, %c0_i32, %c0_i32_0 : i32, i32, i32
  }
  func.func @transform_1(%arg0: i32) -> (i32, i32) {
    %c0_i32 = arith.constant 0 : i32
    %c0_i32_0 = arith.constant 0 : i32
    %c0_i32_1 = arith.constant 0 : i32
    return %c0_i32, %c0_i32_0 : i32, i32
  }
  func.func @transform_2(%arg0: i32) -> (i32, i32) {
    %c0_i32 = arith.constant 0 : i32
    %c0_i32_0 = arith.constant 0 : i32
    %c0_i32_1 = arith.constant 0 : i32
    return %c0_i32, %c0_i32_0 : i32, i32
  }
  func.func @transform_3(%arg0: i32) -> (i32, i32) {
    %c0_i32 = arith.constant 0 : i32
    %c0_i32_0 = arith.constant 0 : i32
    %c0_i32_1 = arith.constant 0 : i32
    return %c0_i32, %c0_i32_0 : i32, i32
  }
  func.func @transform_4(%arg0: i32) -> (i32, i32) {
    %c0_i32 = arith.constant 0 : i32
    %c0_i32_0 = arith.constant 0 : i32
    %c0_i32_1 = arith.constant 0 : i32
    return %c0_i32, %c0_i32_0 : i32, i32
  }
  func.func @transform_5(%arg0: i32) -> (i32, i32, i32) {
    %c0_i32 = arith.constant 0 : i32
    %c0_i32_0 = arith.constant 0 : i32
    %c0_i32_1 = arith.constant 0 : i32
    return %arg0, %c0_i32, %c0_i32_0 : i32, i32, i32
  }
}

</mosaic_0001>

<llo_original>
// kernel: tpu_custom_call.1
$region0: #{tpu_custom_call.1}
  #allocation0 [shape = 'u32[]', space=smem, size = 0x4, offset = 0x4, fixed_abs, tag = 'smem constant byte address 0x4 - core index']
  #allocation1 [shape = 'u32[72,128]{1,0:T(1,128)}', space=vmem, size = 0x9000, scoped, tag = 'internal scratch']
  %s0 = inlined_call_operand.vmem [shape: bf16[4,16,128], index: 0, kind: input, shape index: {}]
  %s1 = inlined_call_operand.vmem [shape: bf16[32,16], index: 1, kind: input, shape index: {}]
  %s2 = inlined_call_operand.vmem [shape: f32[32,1], index: 2, kind: input, shape index: {}]
  %s3 = inlined_call_operand.hbm [shape: f32[32,64], index: 3, kind: input, shape index: {}]
  %s4 = inlined_call_operand.hbm [shape: f32[32,64], index: 4, kind: input, shape index: {}]
  %s5 = inlined_call_operand.hbm [shape: f32[8,32,64], index: 5, kind: output, shape index: {}]
  %s6 = sld [smem:[#allocation0]]
  $region61: #{tpu_custom_call.1} parent=0
    _
  %s8 = ssub.s32 1, %s6
  %s9 = scalar_select 0, %s8, %s6
  $region1: #{tpu_custom_call.1} parent=0
    #allocation2 [shape = 'u8[16384]{0}', space=vmem, size = 0x4000, scoped, tag = 'input window, operand 3, single buffered']
    #allocation3 [shape = 's32[2]{0}', space=sflag, size = 0x8, scoped, tag = 'scoped memory for tpu_custom_call.1']
    #allocation4 [shape = 's32[2]{0}', space=sflag, size = 0x8, scoped, tag = 'scoped memory for tpu_custom_call.1']
    #allocation5 [shape = 'u8[16384]{0}', space=vmem, size = 0x4000, scoped, tag = 'input window, operand 4, single buffered']
    #allocation6 [shape = 's32[1]{0}', space=sflag, size = 0x4, scoped, tag = 'scoped memory for tpu_custom_call.1']
    #allocation7 [shape = 'u8[65536]{0}', space=vmem, size = 0x10000, scoped, tag = 'output window, operand 0']
    %10 = vsyncpa [#allocation3], 0
    %11 = vsyncpa [#allocation6], 0
    %12 = vsyncpa [#allocation4], 0
    %s13 = scalar_lea.sflag [#allocation4], 1
    %14 = vsyncpa %s13, 0
    loop: start=0, step=1, limit=6
    $region2: #{tpu_custom_call.1} parent=1 // loop_pre_header
      _
    $region3: #{tpu_custom_call.1} parent=1 // loop_header
      %s16 = sphi 0, %s20
      %p17 = scmp.ge.s32.totalorder %s16, 6
      %s26 = sphi 0, %s28
      %s29 = sphi 0, %s26
      %s30 = sphi 0, %s29
      %s46 = sphi 0, %s30
      %s50 = sphi 0, %s50
      %s52 = sphi 0, %s50
      %s53 = sphi 0, %s52
      %s67 = sphi 0, %s53
      %s71 = sphi 0, %s71
      %s73 = sphi 0, %s71
      %s74 = sphi 0, %s73
      %s88 = sphi 0, %s74
      %s92 = sphi 0, %s92
      %s94 = sphi 0, %s92
      %s95 = sphi 0, %s94
      %s109 = sphi 0, %s95
      %s113 = sphi 0, %s113
      %s115 = sphi 0, %s113
      %s116 = sphi 0, %s115
      %s130 = sphi 0, %s116
      %s136 = sphi 0, %s138
      %s139 = sphi 0, %s136
      %s140 = sphi 0, %s139
      %s156 = sphi 0, %s140
    $region4: #{tpu_custom_call.1} parent=1 // loop_header_branch
      %19 = sbr.rel (%p17) target = $region8
    $region5: #{tpu_custom_call.1} parent=1 // loop_body
      %s21 = ssub.s32 %s16, 1
      %s22 = ssub.s32 %s16, 2
      %s23 = sadd.s32 %s16, 1
      %s24 = ssub.s32 %s16, %s23
      %p25 = scmp.eq.s32.totalorder %s24, 0
      %s27 = sadd.s32 %s26, 1
      %s28 = scalar_select %p25, %s26, %s27
      %p31 = pneg %p25
      %p32 = scmp.eq.s32.totalorder %s16, 3
      %p33 = por %p31, %p32
      %p34 = scmp.ne.s32.totalorder %s26, %s29
      %p35 = scmp.eq.s32.totalorder %s16, 0
      %p36 = por %p34, %p35
      %p37 = scmp.ne.s32.totalorder %s26, %s29
      %p38 = scmp.eq.s32.totalorder %s21, 3
      %p39 = por %p37, %p38
      %p40 = scmp.ne.s32.totalorder %s29, %s30
      %p41 = scmp.eq.s32.totalorder %s21, 0
      %p42 = por %p40, %p41
      %p43 = scmp.ne.s32.totalorder %s29, %s30
      %p44 = scmp.eq.s32.totalorder %s22, 3
      %p45 = por %p43, %p44
      %p47 = scmp.ne.s32.totalorder %s30, %s46
      %p48 = scmp.eq.s32.totalorder %s22, 0
      %p49 = por %p47, %p48
      %s51 = sadd.s32 %s50, 1
      %p54 = scmp.eq.s32.totalorder %s16, 3
      %p55 = scmp.ne.s32.totalorder %s50, %s52
      %p56 = scmp.eq.s32.totalorder %s16, 0
      %p57 = por %p55, %p56
      %p58 = scmp.ne.s32.totalorder %s50, %s52
      %p59 = scmp.eq.s32.totalorder %s21, 3
      %p60 = por %p58, %p59
      %p61 = scmp.ne.s32.totalorder %s52, %s53
      %p62 = scmp.eq.s32.totalorder %s21, 0
      %p63 = por %p61, %p62
      %p64 = scmp.ne.s32.totalorder %s52, %s53
      %p65 = scmp.eq.s32.totalorder %s22, 3
      %p66 = por %p64, %p65
      %p68 = scmp.ne.s32.totalorder %s53, %s67
      %p69 = scmp.eq.s32.totalorder %s22, 0
      %p70 = por %p68, %p69
      %s72 = sadd.s32 %s71, 1
      %p75 = scmp.eq.s32.totalorder %s16, 3
      %p76 = scmp.ne.s32.totalorder %s71, %s73
      %p77 = scmp.eq.s32.totalorder %s16, 0
      %p78 = por %p76, %p77
      %p79 = scmp.ne.s32.totalorder %s71, %s73
      %p80 = scmp.eq.s32.totalorder %s21, 3
      %p81 = por %p79, %p80
      %p82 = scmp.ne.s32.totalorder %s73, %s74
      %p83 = scmp.eq.s32.totalorder %s21, 0
      %p84 = por %p82, %p83
      %p85 = scmp.ne.s32.totalorder %s73, %s74
      %p86 = scmp.eq.s32.totalorder %s22, 3
      %p87 = por %p85, %p86
      %p89 = scmp.ne.s32.totalorder %s74, %s88
      %p90 = scmp.eq.s32.totalorder %s22, 0
      %p91 = por %p89, %p90
      %s93 = sadd.s32 %s92, 1
      %p96 = scmp.eq.s32.totalorder %s16, 3
      %p97 = scmp.ne.s32.totalorder %s92, %s94
      %p98 = scmp.eq.s32.totalorder %s16, 0
      %p99 = por %p97, %p98
      %p100 = scmp.ne.s32.totalorder %s92, %s94
      %p101 = scmp.eq.s32.totalorder %s21, 3
      %p102 = por %p100, %p101
      %p103 = scmp.ne.s32.totalorder %s94, %s95
      %p104 = scmp.eq.s32.totalorder %s21, 0
      %p105 = por %p103, %p104
      %p106 = scmp.ne.s32.totalorder %s94, %s95
      %p107 = scmp.eq.s32.totalorder %s22, 3
      %p108 = por %p106, %p107
      %p110 = scmp.ne.s32.totalorder %s95, %s109
      %p111 = scmp.eq.s32.totalorder %s22, 0
      %p112 = por %p110, %p111
      %s114 = sadd.s32 %s113, 1
      %p117 = scmp.eq.s32.totalorder %s16, 3
      %p118 = scmp.ne.s32.totalorder %s113, %s115
      %p119 = scmp.eq.s32.totalorder %s16, 0
      %p120 = por %p118, %p119
      %p121 = scmp.ne.s32.totalorder %s113, %s115
      %p122 = scmp.eq.s32.totalorder %s21, 3
      %p123 = por %p121, %p122
      %p124 = scmp.ne.s32.totalorder %s115, %s116
      %p125 = scmp.eq.s32.totalorder %s21, 0
      %p126 = por %p124, %p125
      %p127 = scmp.ne.s32.totalorder %s115, %s116
      %p128 = scmp.eq.s32.totalorder %s22, 3
      %p129 = por %p127, %p128
      %p131 = scmp.ne.s32.totalorder %s116, %s130
      %p132 = scmp.eq.s32.totalorder %s22, 0
      %p133 = por %p131, %p132
      %s134 = ssub.s32 %s16, %s23
      %p135 = scmp.eq.s32.totalorder %s134, 0
      %s137 = sadd.s32 %s136, 1
      %s138 = scalar_select %p135, %s136, %s137
      %p141 = pneg %p135
      %p142 = scmp.eq.s32.totalorder %s16, 3
      %p143 = por %p141, %p142
      %p144 = scmp.ne.s32.totalorder %s136, %s139
      %p145 = scmp.eq.s32.totalorder %s16, 0
      %p146 = por %p144, %p145
      %p147 = scmp.ne.s32.totalorder %s136, %s139
      %p148 = scmp.eq.s32.totalorder %s21, 3
      %p149 = por %p147, %p148
      %p150 = scmp.ne.s32.totalorder %s139, %s140
      %p151 = scmp.eq.s32.totalorder %s21, 0
      %p152 = por %p150, %p151
      %p153 = scmp.ne.s32.totalorder %s139, %s140
      %p154 = scmp.eq.s32.totalorder %s22, 3
      %p155 = por %p153, %p154
      %p157 = scmp.ne.s32.totalorder %s140, %s156
      %p158 = scmp.eq.s32.totalorder %s22, 0
      %p159 = por %p157, %p158
      %p160 = scmp.le.s32.totalorder 1, %s16
      %p161 = scmp.lt.s32.totalorder %s16, 5
      %p162 = pnand %p160, %p161
      %p163 = pneg %p162
      // Predicated region
      $region9: #{tpu_custom_call.1} parent=5 // pred_check
        _
      $region10: #{tpu_custom_call.1} parent=5 // pred_check_branch
        %165 = sbr.rel (%p162) target = $region12
      $region11: #{tpu_custom_call.1} parent=5 // pred_region
        %s166 = ssub.s32 %s16, 1
        // Predicated region
        $region13: #{tpu_custom_call.1} parent=11 // pred_check
          %p167 = pneg %p63
        $region14: #{tpu_custom_call.1} parent=11 // pred_check_branch
          %169 = sbr.rel (%p167) target = $region16
        $region15: #{tpu_custom_call.1} parent=11 // pred_region
          _
        $region16: #{tpu_custom_call.1} parent=11 // pred_fallthru
          _
        // Predicated region
        $region17: #{tpu_custom_call.1} parent=11 // pred_check
          %p170 = pneg %p84
        $region18: #{tpu_custom_call.1} parent=11 // pred_check_branch
          %172 = sbr.rel (%p170) target = $region20
        $region19: #{tpu_custom_call.1} parent=11 // pred_region
          _
        $region20: #{tpu_custom_call.1} parent=11 // pred_fallthru
          _
        // Predicated region
        $region21: #{tpu_custom_call.1} parent=11 // pred_check
          %p173 = pneg %p105
        $region22: #{tpu_custom_call.1} parent=11 // pred_check_branch
          %175 = sbr.rel (%p173) target = $region24
        $region23: #{tpu_custom_call.1} parent=11 // pred_region
          %177 = vsyncadd [#allocation3], 0
          %s178 = sshll.u32 %s3, 4
          %s179 = int_to_ptr.hbm [resolvable:$true] %s178
          %s180 = sshll.u32 [#allocation2], 4
          %s181 = int_to_ptr.vmem [resolvable:$true] %s180
          %186 = dma.hbm_to_vmem [thread:$0]  %s179, 512, %s181, [#allocation3], 128, 128, 8
        $region24: #{tpu_custom_call.1} parent=11 // pred_fallthru
          _
        // Predicated region
        $region25: #{tpu_custom_call.1} parent=11 // pred_check
          %p187 = pneg %p126
        $region26: #{tpu_custom_call.1} parent=11 // pred_check_branch
          %189 = sbr.rel (%p187) target = $region28
        $region27: #{tpu_custom_call.1} parent=11 // pred_region
          %191 = vsyncadd [#allocation6], 0
          %s192 = sshll.u32 %s4, 4
          %s193 = int_to_ptr.hbm [resolvable:$true] %s192
          %s194 = sshll.u32 [#allocation5], 4
          %s195 = int_to_ptr.vmem [resolvable:$true] %s194
          %200 = dma.hbm_to_vmem [thread:$0]  %s193, 512, %s195, [#allocation6], 128, 128, 8
        $region28: #{tpu_custom_call.1} parent=11 // pred_fallthru
          _
      $region12: #{tpu_custom_call.1} parent=5 // pred_fallthru
        _
      %p201 = scmp.lt.s32.totalorder %s16, 4
      // Predicated region
      $region29: #{tpu_custom_call.1} parent=5 // pred_check
        %p202 = pneg %p201
      $region30: #{tpu_custom_call.1} parent=5 // pred_check_branch
        %204 = sbr.rel (%p202) target = $region32
      $region31: #{tpu_custom_call.1} parent=5 // pred_region
        // Predicated region
        $region33: #{tpu_custom_call.1} parent=31 // pred_check
          %p205 = pneg %p36
        $region34: #{tpu_custom_call.1} parent=31 // pred_check_branch
          %207 = sbr.rel (%p205) target = $region36
        $region35: #{tpu_custom_call.1} parent=31 // pred_region
          %p208 = scmp.lt.s32.totalorder %s16, 3
          %s209 = scalar_select %p208, %s16, 3
          %s210 = smul.addr %s209, 2
          %s211 = smul.addr %s210, 4
          %s212 = scalar_lea.vmem %s0, %s211
        $region36: #{tpu_custom_call.1} parent=31 // pred_fallthru
          _
      $region32: #{tpu_custom_call.1} parent=5 // pred_fallthru
        _
      %p213 = scmp.le.s32.totalorder 1, %s16
      %p214 = scmp.lt.s32.totalorder %s16, 5
      %p215 = pnand %p213, %p214
      %p216 = pneg %p215
      // Predicated region
      $region37: #{tpu_custom_call.1} parent=5 // pred_check
        _
      $region38: #{tpu_custom_call.1} parent=5 // pred_check_branch
        %218 = sbr.rel (%p215) target = $region40
      $region39: #{tpu_custom_call.1} parent=5 // pred_region
        %s219 = ssub.s32 %s16, 1
        // Predicated region
        $region41: #{tpu_custom_call.1} parent=39 // pred_check
          %p220 = pneg %p105
        $region42: #{tpu_custom_call.1} parent=39 // pred_check_branch
          %222 = sbr.rel (%p220) target = $region44
        $region43: #{tpu_custom_call.1} parent=39 // pred_region
          %224 = dma.done [#allocation3], 512
        $region44: #{tpu_custom_call.1} parent=39 // pred_fallthru
          _
        // Predicated region
        $region45: #{tpu_custom_call.1} parent=39 // pred_check
          %p225 = pneg %p126
        $region46: #{tpu_custom_call.1} parent=39 // pred_check_branch
          %227 = sbr.rel (%p225) target = $region48
        $region47: #{tpu_custom_call.1} parent=39 // pred_region
          %229 = dma.done [#allocation6], 512
        $region48: #{tpu_custom_call.1} parent=39 // pred_fallthru
          _
        %p230 = scmp.lt.s32.totalorder %s21, 3
        %s231 = scalar_select %p230, %s21, 3
        %s232 = smul.addr %s231, 2
        %s233 = smul.addr %s232, 4
        %s234 = scalar_lea.vmem %s0, %s233
        %p235 = pneg %p42
        %p236 = pneg %p39
        %p237 = pneg %p63
        %p238 = pneg %p60
        %p239 = pneg %p84
        %p240 = pneg %p81
        %p241 = pneg %p105
        %p242 = pneg %p102
        %p243 = pneg %p126
        %p244 = pneg %p123
        %p245 = pneg %p152
        %p246 = pneg %p149
        %s247 = sand.u32 %s139, 1
        %s248 = scalar_lea.sflag [#allocation4], %s247
        %s249 = sand.u32 %s139, 1
        %s250 = smul.addr %s249, 64
        %s251 = scalar_lea.vmem [#allocation7], %s250
        %p252 = scmp.lt.s32.totalorder %s21, 3
        %s253 = scalar_select %p252, %s21, 3
        %s254 = smul.addr %s253, 2
        %s255 = smul.addr %s254, 4
        %s256 = scalar_lea.vmem %s0, %s255
        %s257 = smul.u32 2, %s21
        %v259 = vld [vmem:[%s1] sm:$0xf]
        %v260 = vld [vmem:[%s1 + $0x4] sm:$0xf]
        %v261 = vld [vmem:[%s1 + $0x8] sm:$0xf]
        %v262 = vld [vmem:[%s1 + $0xc] sm:$0xf]
        %v263 = vld [vmem:[%s256] sm:$0xf]
        %v264 = vld [vmem:[%s256 + $0x4] sm:$0xf]
        %v265 = vld [vmem:[%s2] sm:$0xff]
        %v266 = vld [vmem:[%s2 + $0x8] sm:$0xff]
        %v267 = vld [vmem:[%s2 + $0x10] sm:$0xff]
        %v268 = vld [vmem:[%s2 + $0x18] sm:$0xff]
        %270 = vset.pattern.permute.xlu0 0
        %271 = vperm.xlu0 %270, %v265
        %v272 = vpop.permute.xlu0 %271
        %275 = vset.pattern.permute.xlu0 0
        %276 = vperm.xlu0 %275, %v266
        %v277 = vpop.permute.xlu0 %276
        %280 = vset.pattern.permute.xlu0 0
        %281 = vperm.xlu0 %280, %v267
        %v282 = vpop.permute.xlu0 %281
        %285 = vset.pattern.permute.xlu0 0
        %286 = vperm.xlu0 %285, %v268
        %v287 = vpop.permute.xlu0 %286
        %v293 = vunpack.c.l.b16 %v259
        %v294 = vunpack.c.l.b16 %v260
        %v295 = vunpack.c.l.b16 %v261
        %v296 = vunpack.c.l.b16 %v262
        %v297 = vpack.c.b16 %v294, %v293
        %v298 = vpack.c.b16 %v296, %v295
        %v301 = vunpack.c.l.b16 %v263
        %v302 = vunpack.c.l.b16 %v264
        %v303 = vpack.c.b16 %v302, %v301
        %vm305 = vcmask 130048
        %v307 = vsel %vm305, %v297, 0
        %v310 = vsel %vm305, %v298, 0
        %312 = vmatpush.bf16.msra.mxu0 0
        %313 = vmatpush.bf16.msra.mxu0 0
        %314 = vmatpush.bf16.msra.mxu0 0
        %315 = vmatpush.bf16.msra.mxu0 0
        %316 = vmatpush.bf16.msra.mxu0 0
        %317 = vmatpush.bf16.msra.mxu0 0
        %318 = vmatpush.bf16.msra.mxu0 0
        %319 = vmatpush.bf16.msra.mxu0 %v303
        %320 = vmatmul.bf16.gmra.mxu0 %v307
        %v321 = vpop.f32.mrf.mxu0
        %v322 = vadd.f32 %v272, %v321
        %v323 = vpop.f32.mrf.mxu0
        %v324 = vadd.f32 %v277, %v323
        %325 = vmatmul.bf16.gmra.mxu0 %v310
        %v326 = vpop.f32.mrf.mxu0
        %v327 = vadd.f32 %v282, %v326
        %v328 = vpop.f32.mrf.mxu0
        %v329 = vadd.f32 %v287, %v328
        %330 = vdwg.mxu0
        %v331 = vld [vmem:[#allocation2] sm:$0xff]
        %v332 = vld [vmem:[#allocation2 + $0x8] sm:$0xff]
        %v333 = vld [vmem:[#allocation2 + $0x10] sm:$0xff]
        %v334 = vld [vmem:[#allocation2 + $0x18] sm:$0xff]
        %v335 = vld [vmem:[#allocation5] sm:$0xff]
        %v336 = vld [vmem:[#allocation5 + $0x8] sm:$0xff]
        %v337 = vld [vmem:[#allocation5 + $0x10] sm:$0xff]
        %v338 = vld [vmem:[#allocation5 + $0x18] sm:$0xff]
        %vm339 = vcmask 523264
        %v340 = vsel %vm339, %v322, 0.0
        %v341 = vsel %vm339, %v324, 0.0
        %v342 = vadd.f32 %v340, %v341
        %v343 = vsel %vm339, %v327, 0.0
        %v344 = vadd.f32 %v342, %v343
        %v345 = vsel %vm339, %v329, 0.0
        %v346 = vadd.f32 %v344, %v345
        %347 = vadd.xlane.f32.xlu0 %v346
        %v348 = vpop.xlane.xlu0 %347
        %v349 = vrot.slane %v348, 4
        %v350 = vadd.f32 %v348, %v349
        %v351 = vrot.slane %v350, 2
        %v352 = vadd.f32 %v350, %v351
        %v353 = vrot.slane %v352, 1
        %v354 = vadd.f32 %v352, %v353
        %s355 = vtos %v354
        %s356 = smul.f32 %s355, 0.00048828125
        %v357 = vmul.f32 %v322, %v322
        %v358 = vmul.f32 %v324, %v324
        %v359 = vmul.f32 %v327, %v327
        %v360 = vmul.f32 %v329, %v329
        %v361 = vsel %vm339, %v357, 0.0
        %v362 = vsel %vm339, %v358, 0.0
        %v363 = vadd.f32 %v361, %v362
        %v364 = vsel %vm339, %v359, 0.0
        %v365 = vadd.f32 %v363, %v364
        %v366 = vsel %vm339, %v360, 0.0
        %v367 = vadd.f32 %v365, %v366
        %368 = vadd.xlane.f32.xlu0 %v367
        %v369 = vpop.xlane.xlu0 %368
        %v370 = vrot.slane %v369, 4
        %v371 = vadd.f32 %v369, %v370
        %v372 = vrot.slane %v371, 2
        %v373 = vadd.f32 %v371, %v372
        %v374 = vrot.slane %v373, 1
        %v375 = vadd.f32 %v373, %v374
        %s376 = vtos %v375
        %s377 = smul.f32 %s376, 0.00048828125
        %s378 = smul.f32 %s356, %s356
        %s379 = ssub.f32 %s377, %s378
        %s380 = smax.f32 %s379, 0.0
        %s381 = sadd.f32 %s380, 1e-06
        %v382 = vstv %s381
        %v383 = vrsqrt.pop %v382
        %v384 = vmul.f32 %v383, %v382
        %v385 = vmul.f32 %v384, %v383
        %v386 = vmul.f32 0.5, %v385
        %v387 = vsub.f32 1.5, %v386
        %v388 = vmul.f32 %v383, %v387
        %vm389 = vweird.f32 %v382
        %vm390 = vweird.f32 %v383
        %vm391 = vmor %vm389, %vm390
        %v392 = vsel %vm391, %v383, %v388
        %s393 = vtos %v392
        %v394 = vstv %s356
        %v395 = vsub.f32 %v322, %v394
        %v396 = vsub.f32 %v324, %v394
        %v397 = vsub.f32 %v327, %v394
        %v398 = vsub.f32 %v329, %v394
        %v399 = vstv %s393
        %v400 = vmul.f32 %v395, %v399
        %v401 = vmul.f32 %v396, %v399
        %v402 = vmul.f32 %v397, %v399
        %v403 = vmul.f32 %v398, %v399
        %v404 = vmul.f32 %v400, %v331
        %v405 = vmul.f32 %v401, %v332
        %v406 = vmul.f32 %v402, %v333
        %v407 = vmul.f32 %v403, %v334
        %v408 = vadd.f32 %v404, %v335
        %v409 = vadd.f32 %v405, %v336
        %v410 = vadd.f32 %v406, %v337
        %v411 = vadd.f32 %v407, %v338
        %412 = vst.msk [vmem:[%s251] sm:$0xff] %vm339, %v408
        %413 = vst.msk [vmem:[%s251 + $0x8] sm:$0xff] %vm339, %v409
        %414 = vst.msk [vmem:[%s251 + $0x10] sm:$0xff] %vm339, %v410
        %415 = vst.msk [vmem:[%s251 + $0x18] sm:$0xff] %vm339, %v411
        %420 = vrot.lane.b32.xlu0 %v322, 64
        %v421 = vpop.permute.xlu0 %420
        %422 = vrot.lane.b32.xlu0 %v324, 64
        %v423 = vpop.permute.xlu0 %422
        %424 = vrot.lane.b32.xlu0 %v327, 64
        %v425 = vpop.permute.xlu0 %424
        %426 = vrot.lane.b32.xlu0 %v329, 64
        %v427 = vpop.permute.xlu0 %426
        %v432 = vsel %vm339, %v421, 0.0
        %v433 = vsel %vm339, %v423, 0.0
        %v434 = vadd.f32 %v432, %v433
        %v435 = vsel %vm339, %v425, 0.0
        %v436 = vadd.f32 %v434, %v435
        %v437 = vsel %vm339, %v427, 0.0
        %v438 = vadd.f32 %v436, %v437
        %439 = vadd.xlane.f32.xlu0 %v438
        %v440 = vpop.xlane.xlu0 %439
        %v441 = vrot.slane %v440, 4
        %v442 = vadd.f32 %v440, %v441
        %v443 = vrot.slane %v442, 2
        %v444 = vadd.f32 %v442, %v443
        %v445 = vrot.slane %v444, 1
        %v446 = vadd.f32 %v444, %v445
        %s447 = vtos %v446
        %s448 = smul.f32 %s447, 0.00048828125
        %453 = vrot.lane.b32.xlu0 %v357, 64
        %v454 = vpop.permute.xlu0 %453
        %455 = vrot.lane.b32.xlu0 %v358, 64
        %v456 = vpop.permute.xlu0 %455
        %457 = vrot.lane.b32.xlu0 %v359, 64
        %v458 = vpop.permute.xlu0 %457
        %459 = vrot.lane.b32.xlu0 %v360, 64
        %v460 = vpop.permute.xlu0 %459
        %v465 = vsel %vm339, %v454, 0.0
        %v466 = vsel %vm339, %v456, 0.0
        %v467 = vadd.f32 %v465, %v466
        %v468 = vsel %vm339, %v458, 0.0
        %v469 = vadd.f32 %v467, %v468
        %v470 = vsel %vm339, %v460, 0.0
        %v471 = vadd.f32 %v469, %v470
        %472 = vadd.xlane.f32.xlu0 %v471
        %v473 = vpop.xlane.xlu0 %472
        %v474 = vrot.slane %v473, 4
        %v475 = vadd.f32 %v473, %v474
        %v476 = vrot.slane %v475, 2
        %v477 = vadd.f32 %v475, %v476
        %v478 = vrot.slane %v477, 1
        %v479 = vadd.f32 %v477, %v478
        %s480 = vtos %v479
        %s481 = smul.f32 %s480, 0.00048828125
        %s482 = smul.f32 %s448, %s448
        %s483 = ssub.f32 %s481, %s482
        %s484 = smax.f32 %s483, 0.0
        %s485 = sadd.f32 %s484, 1e-06
        %v486 = vstv %s485
        %v487 = vrsqrt.pop %v486
        %v488 = vmul.f32 %v487, %v486
        %v489 = vmul.f32 %v488, %v487
        %v490 = vmul.f32 0.5, %v489
        %v491 = vsub.f32 1.5, %v490
        %v492 = vmul.f32 %v487, %v491
        %vm493 = vweird.f32 %v486
        %vm494 = vweird.f32 %v487
        %vm495 = vmor %vm493, %vm494
        %v496 = vsel %vm495, %v487, %v492
        %s497 = vtos %v496
        %v498 = vstv %s448
        %v499 = vsub.f32 %v322, %v498
        %v500 = vsub.f32 %v324, %v498
        %v501 = vsub.f32 %v327, %v498
        %v502 = vsub.f32 %v329, %v498
        %v503 = vstv %s497
        %v504 = vmul.f32 %v499, %v503
        %v505 = vmul.f32 %v500, %v503
        %v506 = vmul.f32 %v501, %v503
        %v507 = vmul.f32 %v502, %v503
        %512 = vrot.lane.b32.xlu0 %v331, 64
        %v513 = vpop.permute.xlu0 %512
        %514 = vrot.lane.b32.xlu0 %v332, 64
        %v515 = vpop.permute.xlu0 %514
        %516 = vrot.lane.b32.xlu0 %v333, 64
        %v517 = vpop.permute.xlu0 %516
        %518 = vrot.lane.b32.xlu0 %v334, 64
        %v519 = vpop.permute.xlu0 %518
        %v524 = vmul.f32 %v504, %v513
        %v525 = vmul.f32 %v505, %v515
        %v526 = vmul.f32 %v506, %v517
        %v527 = vmul.f32 %v507, %v519
        %532 = vrot.lane.b32.xlu0 %v335, 64
        %v533 = vpop.permute.xlu0 %532
        %534 = vrot.lane.b32.xlu0 %v336, 64
        %v535 = vpop.permute.xlu0 %534
        %536 = vrot.lane.b32.xlu0 %v337, 64
        %v537 = vpop.permute.xlu0 %536
        %538 = vrot.lane.b32.xlu0 %v338, 64
        %v539 = vpop.permute.xlu0 %538
        %v544 = vadd.f32 %v524, %v533
        %v545 = vadd.f32 %v525, %v535
        %v546 = vadd.f32 %v526, %v537
        %v547 = vadd.f32 %v527, %v539
        %552 = vrot.lane.b32.xlu0 %v544, 64
        %v553 = vpop.permute.xlu0 %552
        %554 = vrot.lane.b32.xlu0 %v545, 64
        %v555 = vpop.permute.xlu0 %554
        %556 = vrot.lane.b32.xlu0 %v546, 64
        %v557 = vpop.permute.xlu0 %556
        %558 = vrot.lane.b32.xlu0 %v547, 64
        %v559 = vpop.permute.xlu0 %558
        %s564 = scalar_lea.vmem %s251, 32 [#allocation7]
        %565 = vst.msk [vmem:[%s564] sm:$0xff] %vm339, %v553
        %566 = vst.msk [vmem:[%s564 + $0x8] sm:$0xff] %vm339, %v555
        %567 = vst.msk [vmem:[%s564 + $0x10] sm:$0xff] %vm339, %v557
        %568 = vst.msk [vmem:[%s564 + $0x18] sm:$0xff] %vm339, %v559
        %s569 = sand.u32 %s139, 1
        %s570 = scalar_lea.sflag [#allocation4], %s569
        %s571 = sand.u32 %s139, 1
        %s572 = smul.addr %s571, 64
        %s573 = scalar_lea.vmem [#allocation7], %s572
        // Predicated region
        $region49: #{tpu_custom_call.1} parent=39 // pred_check
          %p574 = pneg %p149
        $region50: #{tpu_custom_call.1} parent=39 // pred_check_branch
          %576 = sbr.rel (%p574) target = $region52
        $region51: #{tpu_custom_call.1} parent=39 // pred_region
          %s577 = smul.u32 2, %s21
          %579 = vsyncadd %s570, 0
          %s580 = smul.addr %s577, 4
          %s581 = smul.addr %s580, 8
          %s582 = scalar_lea.hbm %s5, %s581
          %s583 = sshll.u32 %s573, 4
          %s584 = int_to_ptr.vmem [resolvable:$true] %s583
          %s585 = sshll.u32 %s582, 4
          %s586 = int_to_ptr.hbm [resolvable:$true] %s585
          %591 = dma.vmem_to_hbm [thread:$0]  %s584, 1024, %s586, %s570, 128, 128, 8
        $region52: #{tpu_custom_call.1} parent=39 // pred_fallthru
          _
      $region40: #{tpu_custom_call.1} parent=5 // pred_fallthru
        _
      %p592 = scmp.le.s32.totalorder 2, %s16
      // Predicated region
      $region53: #{tpu_custom_call.1} parent=5 // pred_check
        %p593 = pneg %p592
      $region54: #{tpu_custom_call.1} parent=5 // pred_check_branch
        %595 = sbr.rel (%p593) target = $region56
      $region55: #{tpu_custom_call.1} parent=5 // pred_region
        %s596 = ssub.s32 %s16, 2
        // Predicated region
        $region57: #{tpu_custom_call.1} parent=55 // pred_check
          %p597 = pneg %p155
        $region58: #{tpu_custom_call.1} parent=55 // pred_check_branch
          %599 = sbr.rel (%p597) target = $region60
        $region59: #{tpu_custom_call.1} parent=55 // pred_region
          %s600 = sand.u32 %s140, 1
          %s601 = scalar_lea.sflag [#allocation4], %s600
          %s602 = sand.u32 %s140, 1
          %s603 = smul.addr %s602, 64
          %s604 = scalar_lea.vmem [#allocation7], %s603
          %606 = dma.done %s601, 1024
        $region60: #{tpu_custom_call.1} parent=55 // pred_fallthru
          _
      $region56: #{tpu_custom_call.1} parent=5 // pred_fallthru
        _
    $region6: #{tpu_custom_call.1} parent=1 // loop_footer
      %s20 = sadd.s32 1, %s16
    $region7: #{tpu_custom_call.1} parent=1 // loop_footer_branch
      %15 = sbr.rel target = $region3
    $region8: #{tpu_custom_call.1} parent=1 // loop_exit
      _
    %607 = vsyncpa [#allocation3], 1
    %s608 = scalar_lea.sflag [#allocation3], 1
    %609 = vsyncpa %s608, 1
    %610 = vsyncpa [#allocation6], 1
    %611 = vsyncpa [#allocation4], 1
    %s612 = scalar_lea.sflag [#allocation4], 1
    %613 = vsyncpa %s612, 1

// kernel: tpu_custom_call.1
$region0: #{tpu_custom_call.1}
  #allocation0 [shape = 'u32[]', space=smem, size = 0x4, offset = 0x4, fixed_abs, tag = 'smem constant byte address 0x4 - core index']
  #allocation1 [shape = 'u32[72,128]{1,0:T(1,128)}', space=vmem, size = 0x9000, scoped, tag = 'internal scratch']
  %s0 = inlined_call_operand.vmem [shape: bf16[4,16,128], index: 0, kind: input, shape index: {}]
  %s1 = inlined_call_operand.vmem [shape: bf16[32,16], index: 1, kind: input, shape index: {}]
  %s2 = inlined_call_operand.vmem [shape: f32[32,1], index: 2, kind: input, shape index: {}]
  %s3 = inlined_call_operand.hbm [shape: f32[32,64], index: 3, kind: input, shape index: {}]
  %s4 = inlined_call_operand.hbm [shape: f32[32,64], index: 4, kind: input, shape index: {}]
  %s5 = inlined_call_operand.hbm [shape: f32[8,32,64], index: 5, kind: output, shape index: {}]
  %s6 = sld [smem:[#allocation0]]
  $region61: #{tpu_custom_call.1} parent=0
    _
  %s8 = ssub.s32 1, %s6
  %s9 = scalar_select 0, %s8, %s6
  $region1: #{tpu_custom_call.1} parent=0
    #allocation2 [shape = 'u8[16384]{0}', space=vmem, size = 0x4000, scoped, tag = 'input window, operand 3, single buffered']
    #allocation3 [shape = 's32[2]{0}', space=sflag, size = 0x8, scoped, tag = 'scoped memory for tpu_custom_call.1']
    #allocation4 [shape = 's32[2]{0}', space=sflag, size = 0x8, scoped, tag = 'scoped memory for tpu_custom_call.1']
    #allocation5 [shape = 'u8[16384]{0}', space=vmem, size = 0x4000, scoped, tag = 'input window, operand 4, single buffered']
    #allocation6 [shape = 's32[1]{0}', space=sflag, size = 0x4, scoped, tag = 'scoped memory for tpu_custom_call.1']
    #allocation7 [shape = 'u8[65536]{0}', space=vmem, size = 0x10000, scoped, tag = 'output window, operand 0']
    %10 = vsyncpa [#allocation3], 0
    %11 = vsyncpa [#allocation6], 0
    %12 = vsyncpa [#allocation4], 0
    %s13 = scalar_lea.sflag [#allocation4], 1
    %14 = vsyncpa %s13, 0
    loop: start=0, step=1, limit=6
    $region2: #{tpu_custom_call.1} parent=1 // loop_pre_header
      _
    $region3: #{tpu_custom_call.1} parent=1 // loop_header
      %s16 = sphi 0, %s20
      %p17 = scmp.ge.s32.totalorder %s16, 6
      %s26 = sphi 0, %s28
      %s29 = sphi 0, %s26
      %s30 = sphi 0, %s29
      %s46 = sphi 0, %s30
      %s50 = sphi 0, %s50
      %s52 = sphi 0, %s50
      %s53 = sphi 0, %s52
      %s67 = sphi 0, %s53
      %s71 = sphi 0, %s71
      %s73 = sphi 0, %s71
      %s74 = sphi 0, %s73
      %s88 = sphi 0, %s74
      %s92 = sphi 0, %s92
      %s94 = sphi 0, %s92
      %s95 = sphi 0, %s94
      %s109 = sphi 0, %s95
      %s113 = sphi 0, %s113
      %s115 = sphi 0, %s113
      %s116 = sphi 0, %s115
      %s130 = sphi 0, %s116
      %s136 = sphi 0, %s138
      %s139 = sphi 0, %s136
      %s140 = sphi 0, %s139
      %s156 = sphi 0, %s140
    $region4: #{tpu_custom_call.1} parent=1 // loop_header_branch
      %19 = sbr.rel (%p17) target = $region8
    $region5: #{tpu_custom_call.1} parent=1 // loop_body
      %s21 = ssub.s32 %s16, 1
      %s22 = ssub.s32 %s16, 2
      %s23 = sadd.s32 %s16, 1
      %s24 = ssub.s32 %s16, %s23
      %p25 = scmp.eq.s32.totalorder %s24, 0
      %s27 = sadd.s32 %s26, 1
      %s28 = scalar_select %p25, %s26, %s27
      %p31 = pneg %p25
      %p32 = scmp.eq.s32.totalorder %s16, 3
      %p33 = por %p31, %p32
      %p34 = scmp.ne.s32.totalorder %s26, %s29
      %p35 = scmp.eq.s32.totalorder %s16, 0
      %p36 = por %p34, %p35
      %p37 = scmp.ne.s32.totalorder %s26, %s29
      %p38 = scmp.eq.s32.totalorder %s21, 3
      %p39 = por %p37, %p38
      %p40 = scmp.ne.s32.totalorder %s29, %s30
      %p41 = scmp.eq.s32.totalorder %s21, 0
      %p42 = por %p40, %p41
      %p43 = scmp.ne.s32.totalorder %s29, %s30
      %p44 = scmp.eq.s32.totalorder %s22, 3
      %p45 = por %p43, %p44
      %p47 = scmp.ne.s32.totalorder %s30, %s46
      %p48 = scmp.eq.s32.totalorder %s22, 0
      %p49 = por %p47, %p48
      %s51 = sadd.s32 %s50, 1
      %p54 = scmp.eq.s32.totalorder %s16, 3
      %p55 = scmp.ne.s32.totalorder %s50, %s52
      %p56 = scmp.eq.s32.totalorder %s16, 0
      %p57 = por %p55, %p56
      %p58 = scmp.ne.s32.totalorder %s50, %s52
      %p59 = scmp.eq.s32.totalorder %s21, 3
      %p60 = por %p58, %p59
      %p61 = scmp.ne.s32.totalorder %s52, %s53
      %p62 = scmp.eq.s32.totalorder %s21, 0
      %p63 = por %p61, %p62
      %p64 = scmp.ne.s32.totalorder %s52, %s53
      %p65 = scmp.eq.s32.totalorder %s22, 3
      %p66 = por %p64, %p65
      %p68 = scmp.ne.s32.totalorder %s53, %s67
      %p69 = scmp.eq.s32.totalorder %s22, 0
      %p70 = por %p68, %p69
      %s72 = sadd.s32 %s71, 1
      %p75 = scmp.eq.s32.totalorder %s16, 3
      %p76 = scmp.ne.s32.totalorder %s71, %s73
      %p77 = scmp.eq.s32.totalorder %s16, 0
      %p78 = por %p76, %p77
      %p79 = scmp.ne.s32.totalorder %s71, %s73
      %p80 = scmp.eq.s32.totalorder %s21, 3
      %p81 = por %p79, %p80
      %p82 = scmp.ne.s32.totalorder %s73, %s74
      %p83 = scmp.eq.s32.totalorder %s21, 0
      %p84 = por %p82, %p83
      %p85 = scmp.ne.s32.totalorder %s73, %s74
      %p86 = scmp.eq.s32.totalorder %s22, 3
      %p87 = por %p85, %p86
      %p89 = scmp.ne.s32.totalorder %s74, %s88
      %p90 = scmp.eq.s32.totalorder %s22, 0
      %p91 = por %p89, %p90
      %s93 = sadd.s32 %s92, 1
      %p96 = scmp.eq.s32.totalorder %s16, 3
      %p97 = scmp.ne.s32.totalorder %s92, %s94
      %p98 = scmp.eq.s32.totalorder %s16, 0
      %p99 = por %p97, %p98
      %p100 = scmp.ne.s32.totalorder %s92, %s94
      %p101 = scmp.eq.s32.totalorder %s21, 3
      %p102 = por %p100, %p101
      %p103 = scmp.ne.s32.totalorder %s94, %s95
      %p104 = scmp.eq.s32.totalorder %s21, 0
      %p105 = por %p103, %p104
      %p106 = scmp.ne.s32.totalorder %s94, %s95
      %p107 = scmp.eq.s32.totalorder %s22, 3
      %p108 = por %p106, %p107
      %p110 = scmp.ne.s32.totalorder %s95, %s109
      %p111 = scmp.eq.s32.totalorder %s22, 0
      %p112 = por %p110, %p111
      %s114 = sadd.s32 %s113, 1
      %p117 = scmp.eq.s32.totalorder %s16, 3
      %p118 = scmp.ne.s32.totalorder %s113, %s115
      %p119 = scmp.eq.s32.totalorder %s16, 0
      %p120 = por %p118, %p119
      %p121 = scmp.ne.s32.totalorder %s113, %s115
      %p122 = scmp.eq.s32.totalorder %s21, 3
      %p123 = por %p121, %p122
      %p124 = scmp.ne.s32.totalorder %s115, %s116
      %p125 = scmp.eq.s32.totalorder %s21, 0
      %p126 = por %p124, %p125
      %p127 = scmp.ne.s32.totalorder %s115, %s116
      %p128 = scmp.eq.s32.totalorder %s22, 3
      %p129 = por %p127, %p128
      %p131 = scmp.ne.s32.totalorder %s116, %s130
      %p132 = scmp.eq.s32.totalorder %s22, 0
      %p133 = por %p131, %p132
      %s134 = ssub.s32 %s16, %s23
      %p135 = scmp.eq.s32.totalorder %s134, 0
      %s137 = sadd.s32 %s136, 1
      %s138 = scalar_select %p135, %s136, %s137
      %p141 = pneg %p135
      %p142 = scmp.eq.s32.totalorder %s16, 3
      %p143 = por %p141, %p142
      %p144 = scmp.ne.s32.totalorder %s136, %s139
      %p145 = scmp.eq.s32.totalorder %s16, 0
      %p146 = por %p144, %p145
      %p147 = scmp.ne.s32.totalorder %s136, %s139
      %p148 = scmp.eq.s32.totalorder %s21, 3
      %p149 = por %p147, %p148
      %p150 = scmp.ne.s32.totalorder %s139, %s140
      %p151 = scmp.eq.s32.totalorder %s21, 0
      %p152 = por %p150, %p151
      %p153 = scmp.ne.s32.totalorder %s139, %s140
      %p154 = scmp.eq.s32.totalorder %s22, 3
      %p155 = por %p153, %p154
      %p157 = scmp.ne.s32.totalorder %s140, %s156
      %p158 = scmp.eq.s32.totalorder %s22, 0
      %p159 = por %p157, %p158
      %p160 = scmp.le.s32.totalorder 1, %s16
      %p161 = scmp.lt.s32.totalorder %s16, 5
      %p162 = pnand %p160, %p161
      %p163 = pneg %p162
      // Predicated region
      $region9: #{tpu_custom_call.1} parent=5 // pred_check
        _
      $region10: #{tpu_custom_call.1} parent=5 // pred_check_branch
        %165 = sbr.rel (%p162) target = $region12
      $region11: #{tpu_custom_call.1} parent=5 // pred_region
        %s166 = ssub.s32 %s16, 1
        // Predicated region
        $region13: #{tpu_custom_call.1} parent=11 // pred_check
          %p167 = pneg %p63
        $region14: #{tpu_custom_call.1} parent=11 // pred_check_branch
          %169 = sbr.rel (%p167) target = $region16
        $region15: #{tpu_custom_call.1} parent=11 // pred_region
          _
        $region16: #{tpu_custom_call.1} parent=11 // pred_fallthru
          _
        // Predicated region
        $region17: #{tpu_custom_call.1} parent=11 // pred_check
          %p170 = pneg %p84
        $region18: #{tpu_custom_call.1} parent=11 // pred_check_branch
          %172 = sbr.rel (%p170) target = $region20
        $region19: #{tpu_custom_call.1} parent=11 // pred_region
          _
        $region20: #{tpu_custom_call.1} parent=11 // pred_fallthru
          _
        // Predicated region
        $region21: #{tpu_custom_call.1} parent=11 // pred_check
          %p173 = pneg %p105
        $region22: #{tpu_custom_call.1} parent=11 // pred_check_branch
          %175 = sbr.rel (%p173) target = $region24
        $region23: #{tpu_custom_call.1} parent=11 // pred_region
          %177 = vsyncadd [#allocation3], 0
          %s178 = sshll.u32 %s3, 4
          %s179 = int_to_ptr.hbm [resolvable:$true] %s178
          %s180 = sshll.u32 [#allocation2], 4
          %s181 = int_to_ptr.vmem [resolvable:$true] %s180
          %186 = dma.hbm_to_vmem [thread:$0]  %s179, 512, %s181, [#allocation3], 128, 128, 8
        $region24: #{tpu_custom_call.1} parent=11 // pred_fallthru
          _
        // Predicated region
        $region25: #{tpu_custom_call.1} parent=11 // pred_check
          %p187 = pneg %p126
        $region26: #{tpu_custom_call.1} parent=11 // pred_check_branch
          %189 = sbr.rel (%p187) target = $region28
        $region27: #{tpu_custom_call.1} parent=11 // pred_region
          %191 = vsyncadd [#allocation6], 0
          %s192 = sshll.u32 %s4, 4
          %s193 = int_to_ptr.hbm [resolvable:$true] %s192
          %s194 = sshll.u32 [#allocation5], 4
          %s195 = int_to_ptr.vmem [resolvable:$true] %s194
          %200 = dma.hbm_to_vmem [thread:$0]  %s193, 512, %s195, [#allocation6], 128, 128, 8
        $region28: #{tpu_custom_call.1} parent=11 // pred_fallthru
          _
      $region12: #{tpu_custom_call.1} parent=5 // pred_fallthru
        _
      %p201 = scmp.lt.s32.totalorder %s16, 4
      // Predicated region
      $region29: #{tpu_custom_call.1} parent=5 // pred_check
        %p202 = pneg %p201
      $region30: #{tpu_custom_call.1} parent=5 // pred_check_branch
        %204 = sbr.rel (%p202) target = $region32
      $region31: #{tpu_custom_call.1} parent=5 // pred_region
        // Predicated region
        $region33: #{tpu_custom_call.1} parent=31 // pred_check
          %p205 = pneg %p36
        $region34: #{tpu_custom_call.1} parent=31 // pred_check_branch
          %207 = sbr.rel (%p205) target = $region36
        $region35: #{tpu_custom_call.1} parent=31 // pred_region
          %p208 = scmp.lt.s32.totalorder %s16, 3
          %s209 = scalar_select %p208, %s16, 3
          %s210 = smul.addr %s209, 2
          %s211 = smul.addr %s210, 4
          %s212 = scalar_lea.vmem %s0, %s211
        $region36: #{tpu_custom_call.1} parent=31 // pred_fallthru
          _
      $region32: #{tpu_custom_call.1} parent=5 // pred_fallthru
        _
      %p213 = scmp.le.s32.totalorder 1, %s16
      %p214 = scmp.lt.s32.totalorder %s16, 5
      %p215 = pnand %p213, %p214
      %p216 = pneg %p215
      // Predicated region
      $region37: #{tpu_custom_call.1} parent=5 // pred_check
        _
      $region38: #{tpu_custom_call.1} parent=5 // pred_check_branch
        %218 = sbr.rel (%p215) target = $region40
      $region39: #{tpu_custom_call.1} parent=5 // pred_region
        %s219 = ssub.s32 %s16, 1
        // Predicated region
        $region41: #{tpu_custom_call.1} parent=39 // pred_check
          %p220 = pneg %p105
        $region42: #{tpu_custom_call.1} parent=39 // pred_check_branch
          %222 = sbr.rel (%p220) target = $region44
        $region43: #{tpu_custom_call.1} parent=39 // pred_region
          %224 = dma.done [#allocation3], 512
        $region44: #{tpu_custom_call.1} parent=39 // pred_fallthru
          _
        // Predicated region
        $region45: #{tpu_custom_call.1} parent=39 // pred_check
          %p225 = pneg %p126
        $region46: #{tpu_custom_call.1} parent=39 // pred_check_branch
          %227 = sbr.rel (%p225) target = $region48
        $region47: #{tpu_custom_call.1} parent=39 // pred_region
          %229 = dma.done [#allocation6], 512
        $region48: #{tpu_custom_call.1} parent=39 // pred_fallthru
          _
        %p230 = scmp.lt.s32.totalorder %s21, 3
        %s231 = scalar_select %p230, %s21, 3
        %s232 = smul.addr %s231, 2
        %s233 = smul.addr %s232, 4
        %s234 = scalar_lea.vmem %s0, %s233
        %p235 = pneg %p42
        %p236 = pneg %p39
        %p237 = pneg %p63
        %p238 = pneg %p60
        %p239 = pneg %p84
        %p240 = pneg %p81
        %p241 = pneg %p105
        %p242 = pneg %p102
        %p243 = pneg %p126
        %p244 = pneg %p123
        %p245 = pneg %p152
        %p246 = pneg %p149
        %s247 = sand.u32 %s139, 1
        %s248 = scalar_lea.sflag [#allocation4], %s247
        %s249 = sand.u32 %s139, 1
        %s250 = smul.addr %s249, 64
        %s251 = scalar_lea.vmem [#allocation7], %s250
        %p252 = scmp.lt.s32.totalorder %s21, 3
        %s253 = scalar_select %p252, %s21, 3
        %s254 = smul.addr %s253, 2
        %s255 = smul.addr %s254, 4
        %s256 = scalar_lea.vmem %s0, %s255
        %s257 = smul.u32 2, %s21
        %v259 = vld [vmem:[%s1] sm:$0xf]
        %v260 = vld [vmem:[%s1 + $0x4] sm:$0xf]
        %v261 = vld [vmem:[%s1 + $0x8] sm:$0xf]
        %v262 = vld [vmem:[%s1 + $0xc] sm:$0xf]
        %v263 = vld [vmem:[%s256] sm:$0xf]
        %v264 = vld [vmem:[%s256 + $0x4] sm:$0xf]
        %v265 = vld [vmem:[%s2] sm:$0xff]
        %v266 = vld [vmem:[%s2 + $0x8] sm:$0xff]
        %v267 = vld [vmem:[%s2 + $0x10] sm:$0xff]
        %v268 = vld [vmem:[%s2 + $0x18] sm:$0xff]
        %270 = vset.pattern.permute.xlu0 0
        %271 = vperm.xlu0 %270, %v265
        %v272 = vpop.permute.xlu0 %271
        %275 = vset.pattern.permute.xlu0 0
        %276 = vperm.xlu0 %275, %v266
        %v277 = vpop.permute.xlu0 %276
        %280 = vset.pattern.permute.xlu0 0
        %281 = vperm.xlu0 %280, %v267
        %v282 = vpop.permute.xlu0 %281
        %285 = vset.pattern.permute.xlu0 0
        %286 = vperm.xlu0 %285, %v268
        %v287 = vpop.permute.xlu0 %286
        %v293 = vunpack.c.l.b16 %v259
        %v294 = vunpack.c.l.b16 %v260
        %v295 = vunpack.c.l.b16 %v261
        %v296 = vunpack.c.l.b16 %v262
        %v297 = vpack.c.b16 %v294, %v293
        %v298 = vpack.c.b16 %v296, %v295
        %v301 = vunpack.c.l.b16 %v263
        %v302 = vunpack.c.l.b16 %v264
        %v303 = vpack.c.b16 %v302, %v301
        %vm305 = vcmask 130048
        %v307 = vsel %vm305, %v297, 0
        %v310 = vsel %vm305, %v298, 0
        %312 = vmatpush.bf16.msra.mxu0 0
        %313 = vmatpush.bf16.msra.mxu0 0
        %314 = vmatpush.bf16.msra.mxu0 0
        %315 = vmatpush.bf16.msra.mxu0 0
        %316 = vmatpush.bf16.msra.mxu0 0
        %317 = vmatpush.bf16.msra.mxu0 0
        %318 = vmatpush.bf16.msra.mxu0 0
        %319 = vmatpush.bf16.msra.mxu0 %v303
        %320 = vmatmul.bf16.gmra.mxu0 %v307
        %v321 = vpop.f32.mrf.mxu0
        %v322 = vadd.f32 %v272, %v321
        %v323 = vpop.f32.mrf.mxu0
        %v324 = vadd.f32 %v277, %v323
        %325 = vmatmul.bf16.gmra.mxu0 %v310
        %v326 = vpop.f32.mrf.mxu0
        %v327 = vadd.f32 %v282, %v326
        %v328 = vpop.f32.mrf.mxu0
        %v329 = vadd.f32 %v287, %v328
        %330 = vdwg.mxu0
        %v331 = vld [vmem:[#allocation2] sm:$0xff]
        %v332 = vld [vmem:[#allocation2 + $0x8] sm:$0xff]
        %v333 = vld [vmem:[#allocation2 + $0x10] sm:$0xff]
        %v334 = vld [vmem:[#allocation2 + $0x18] sm:$0xff]
        %v335 = vld [vmem:[#allocation5] sm:$0xff]
        %v336 = vld [vmem:[#allocation5 + $0x8] sm:$0xff]
        %v337 = vld [vmem:[#allocation5 + $0x10] sm:$0xff]
        %v338 = vld [vmem:[#allocation5 + $0x18] sm:$0xff]
        %vm339 = vcmask 523264
        %v340 = vsel %vm339, %v322, 0.0
        %v341 = vsel %vm339, %v324, 0.0
        %v342 = vadd.f32 %v340, %v341
        %v343 = vsel %vm339, %v327, 0.0
        %v344 = vadd.f32 %v342, %v343
        %v345 = vsel %vm339, %v329, 0.0
        %v346 = vadd.f32 %v344, %v345
        %347 = vadd.xlane.f32.xlu0 %v346
        %v348 = vpop.xlane.xlu0 %347
        %v349 = vrot.slane %v348, 4
        %v350 = vadd.f32 %v348, %v349
        %v351 = vrot.slane %v350, 2
        %v352 = vadd.f32 %v350, %v351
        %v353 = vrot.slane %v352, 1
        %v354 = vadd.f32 %v352, %v353
        %s355 = vtos %v354
        %s356 = smul.f32 %s355, 0.00048828125
        %v357 = vmul.f32 %v322, %v322
        %v358 = vmul.f32 %v324, %v324
        %v359 = vmul.f32 %v327, %v327
        %v360 = vmul.f32 %v329, %v329
        %v361 = vsel %vm339, %v357, 0.0
        %v362 = vsel %vm339, %v358, 0.0
        %v363 = vadd.f32 %v361, %v362
        %v364 = vsel %vm339, %v359, 0.0
        %v365 = vadd.f32 %v363, %v364
        %v366 = vsel %vm339, %v360, 0.0
        %v367 = vadd.f32 %v365, %v366
        %368 = vadd.xlane.f32.xlu0 %v367
        %v369 = vpop.xlane.xlu0 %368
        %v370 = vrot.slane %v369, 4
        %v371 = vadd.f32 %v369, %v370
        %v372 = vrot.slane %v371, 2
        %v373 = vadd.f32 %v371, %v372
        %v374 = vrot.slane %v373, 1
        %v375 = vadd.f32 %v373, %v374
        %s376 = vtos %v375
        %s377 = smul.f32 %s376, 0.00048828125
        %s378 = smul.f32 %s356, %s356
        %s379 = ssub.f32 %s377, %s378
        %s380 = smax.f32 %s379, 0.0
        %s381 = sadd.f32 %s380, 1e-06
        %v382 = vstv %s381
        %v383 = vrsqrt.pop %v382
        %v384 = vmul.f32 %v383, %v382
        %v385 = vmul.f32 %v384, %v383
        %v386 = vmul.f32 0.5, %v385
        %v387 = vsub.f32 1.5, %v386
        %v388 = vmul.f32 %v383, %v387
        %vm389 = vweird.f32 %v382
        %vm390 = vweird.f32 %v383
        %vm391 = vmor %vm389, %vm390
        %v392 = vsel %vm391, %v383, %v388
        %s393 = vtos %v392
        %v394 = vstv %s356
        %v395 = vsub.f32 %v322, %v394
        %v396 = vsub.f32 %v324, %v394
        %v397 = vsub.f32 %v327, %v394
        %v398 = vsub.f32 %v329, %v394
        %v399 = vstv %s393
        %v400 = vmul.f32 %v395, %v399
        %v401 = vmul.f32 %v396, %v399
        %v402 = vmul.f32 %v397, %v399
        %v403 = vmul.f32 %v398, %v399
        %v404 = vmul.f32 %v400, %v331
        %v405 = vmul.f32 %v401, %v332
        %v406 = vmul.f32 %v402, %v333
        %v407 = vmul.f32 %v403, %v334
        %v408 = vadd.f32 %v404, %v335
        %v409 = vadd.f32 %v405, %v336
        %v410 = vadd.f32 %v406, %v337
        %v411 = vadd.f32 %v407, %v338
        %412 = vst.msk [vmem:[%s251] sm:$0xff] %vm339, %v408
        %413 = vst.msk [vmem:[%s251 + $0x8] sm:$0xff] %vm339, %v409
        %414 = vst.msk [vmem:[%s251 + $0x10] sm:$0xff] %vm339, %v410
        %415 = vst.msk [vmem:[%s251 + $0x18] sm:$0xff] %vm339, %v411
        %420 = vrot.lane.b32.xlu0 %v322, 64
        %v421 = vpop.permute.xlu0 %420
        %422 = vrot.lane.b32.xlu0 %v324, 64
        %v423 = vpop.permute.xlu0 %422
        %424 = vrot.lane.b32.xlu0 %v327, 64
        %v425 = vpop.permute.xlu0 %424
        %426 = vrot.lane.b32.xlu0 %v329, 64
        %v427 = vpop.permute.xlu0 %426
        %v432 = vsel %vm339, %v421, 0.0
        %v433 = vsel %vm339, %v423, 0.0
        %v434 = vadd.f32 %v432, %v433
        %v435 = vsel %vm339, %v425, 0.0
        %v436 = vadd.f32 %v434, %v435
        %v437 = vsel %vm339, %v427, 0.0
        %v438 = vadd.f32 %v436, %v437
        %439 = vadd.xlane.f32.xlu0 %v438
        %v440 = vpop.xlane.xlu0 %439
        %v441 = vrot.slane %v440, 4
        %v442 = vadd.f32 %v440, %v441
        %v443 = vrot.slane %v442, 2
        %v444 = vadd.f32 %v442, %v443
        %v445 = vrot.slane %v444, 1
        %v446 = vadd.f32 %v444, %v445
        %s447 = vtos %v446
        %s448 = smul.f32 %s447, 0.00048828125
        %453 = vrot.lane.b32.xlu0 %v357, 64
        %v454 = vpop.permute.xlu0 %453
        %455 = vrot.lane.b32.xlu0 %v358, 64
        %v456 = vpop.permute.xlu0 %455
        %457 = vrot.lane.b32.xlu0 %v359, 64
        %v458 = vpop.permute.xlu0 %457
        %459 = vrot.lane.b32.xlu0 %v360, 64
        %v460 = vpop.permute.xlu0 %459
        %v465 = vsel %vm339, %v454, 0.0
        %v466 = vsel %vm339, %v456, 0.0
        %v467 = vadd.f32 %v465, %v466
        %v468 = vsel %vm339, %v458, 0.0
        %v469 = vadd.f32 %v467, %v468
        %v470 = vsel %vm339, %v460, 0.0
        %v471 = vadd.f32 %v469, %v470
        %472 = vadd.xlane.f32.xlu0 %v471
        %v473 = vpop.xlane.xlu0 %472
        %v474 = vrot.slane %v473, 4
        %v475 = vadd.f32 %v473, %v474
        %v476 = vrot.slane %v475, 2
        %v477 = vadd.f32 %v475, %v476
        %v478 = vrot.slane %v477, 1
        %v479 = vadd.f32 %v477, %v478
        %s480 = vtos %v479
        %s481 = smul.f32 %s480, 0.00048828125
        %s482 = smul.f32 %s448, %s448
        %s483 = ssub.f32 %s481, %s482
        %s484 = smax.f32 %s483, 0.0
        %s485 = sadd.f32 %s484, 1e-06
        %v486 = vstv %s485
        %v487 = vrsqrt.pop %v486
        %v488 = vmul.f32 %v487, %v486
        %v489 = vmul.f32 %v488, %v487
        %v490 = vmul.f32 0.5, %v489
        %v491 = vsub.f32 1.5, %v490
        %v492 = vmul.f32 %v487, %v491
        %vm493 = vweird.f32 %v486
        %vm494 = vweird.f32 %v487
        %vm495 = vmor %vm493, %vm494
        %v496 = vsel %vm495, %v487, %v492
        %s497 = vtos %v496
        %v498 = vstv %s448
        %v499 = vsub.f32 %v322, %v498
        %v500 = vsub.f32 %v324, %v498
        %v501 = vsub.f32 %v327, %v498
        %v502 = vsub.f32 %v329, %v498
        %v503 = vstv %s497
        %v504 = vmul.f32 %v499, %v503
        %v505 = vmul.f32 %v500, %v503
        %v506 = vmul.f32 %v501, %v503
        %v507 = vmul.f32 %v502, %v503
        %512 = vrot.lane.b32.xlu0 %v331, 64
        %v513 = vpop.permute.xlu0 %512
        %514 = vrot.lane.b32.xlu0 %v332, 64
        %v515 = vpop.permute.xlu0 %514
        %516 = vrot.lane.b32.xlu0 %v333, 64
        %v517 = vpop.permute.xlu0 %516
        %518 = vrot.lane.b32.xlu0 %v334, 64
        %v519 = vpop.permute.xlu0 %518
        %v524 = vmul.f32 %v504, %v513
        %v525 = vmul.f32 %v505, %v515
        %v526 = vmul.f32 %v506, %v517
        %v527 = vmul.f32 %v507, %v519
        %532 = vrot.lane.b32.xlu0 %v335, 64
        %v533 = vpop.permute.xlu0 %532
        %534 = vrot.lane.b32.xlu0 %v336, 64
        %v535 = vpop.permute.xlu0 %534
        %536 = vrot.lane.b32.xlu0 %v337, 64
        %v537 = vpop.permute.xlu0 %536
        %538 = vrot.lane.b32.xlu0 %v338, 64
        %v539 = vpop.permute.xlu0 %538
        %v544 = vadd.f32 %v524, %v533
        %v545 = vadd.f32 %v525, %v535
        %v546 = vadd.f32 %v526, %v537
        %v547 = vadd.f32 %v527, %v539
        %552 = vrot.lane.b32.xlu0 %v544, 64
        %v553 = vpop.permute.xlu0 %552
        %554 = vrot.lane.b32.xlu0 %v545, 64
        %v555 = vpop.permute.xlu0 %554
        %556 = vrot.lane.b32.xlu0 %v546, 64
        %v557 = vpop.permute.xlu0 %556
        %558 = vrot.lane.b32.xlu0 %v547, 64
        %v559 = vpop.permute.xlu0 %558
        %s564 = scalar_lea.vmem %s251, 32 [#allocation7]
        %565 = vst.msk [vmem:[%s564] sm:$0xff] %vm339, %v553
        %566 = vst.msk [vmem:[%s564 + $0x8] sm:$0xff] %vm339, %v555
        %567 = vst.msk [vmem:[%s564 + $0x10] sm:$0xff] %vm339, %v557
        %568 = vst.msk [vmem:[%s564 + $0x18] sm:$0xff] %vm339, %v559
        %s569 = sand.u32 %s139, 1
        %s570 = scalar_lea.sflag [#allocation4], %s569
        %s571 = sand.u32 %s139, 1
        %s572 = smul.addr %s571, 64
        %s573 = scalar_lea.vmem [#allocation7], %s572
        // Predicated region
        $region49: #{tpu_custom_call.1} parent=39 // pred_check
          %p574 = pneg %p149
        $region50: #{tpu_custom_call.1} parent=39 // pred_check_branch
          %576 = sbr.rel (%p574) target = $region52
        $region51: #{tpu_custom_call.1} parent=39 // pred_region
          %s577 = smul.u32 2, %s21
          %579 = vsyncadd %s570, 0
          %s580 = smul.addr %s577, 4
          %s581 = smul.addr %s580, 8
          %s582 = scalar_lea.hbm %s5, %s581
          %s583 = sshll.u32 %s573, 4
          %s584 = int_to_ptr.vmem [resolvable:$true] %s583
          %s585 = sshll.u32 %s582, 4
          %s586 = int_to_ptr.hbm [resolvable:$true] %s585
          %591 = dma.vmem_to_hbm [thread:$0]  %s584, 1024, %s586, %s570, 128, 128, 8
        $region52: #{tpu_custom_call.1} parent=39 // pred_fallthru
          _
      $region40: #{tpu_custom_call.1} parent=5 // pred_fallthru
        _
      %p592 = scmp.le.s32.totalorder 2, %s16
      // Predicated region
      $region53: #{tpu_custom_call.1} parent=5 // pred_check
        %p593 = pneg %p592
      $region54: #{tpu_custom_call.1} parent=5 // pred_check_branch
        %595 = sbr.rel (%p593) target = $region56
      $region55: #{tpu_custom_call.1} parent=5 // pred_region
        %s596 = ssub.s32 %s16, 2
        // Predicated region
        $region57: #{tpu_custom_call.1} parent=55 // pred_check
          %p597 = pneg %p155
        $region58: #{tpu_custom_call.1} parent=55 // pred_check_branch
          %599 = sbr.rel (%p597) target = $region60
        $region59: #{tpu_custom_call.1} parent=55 // pred_region
          %s600 = sand.u32 %s140, 1
          %s601 = scalar_lea.sflag [#allocation4], %s600
          %s602 = sand.u32 %s140, 1
          %s603 = smul.addr %s602, 64
          %s604 = scalar_lea.vmem [#allocation7], %s603
          %606 = dma.done %s601, 1024
        $region60: #{tpu_custom_call.1} parent=55 // pred_fallthru
          _
      $region56: #{tpu_custom_call.1} parent=5 // pred_fallthru
        _
    $region6: #{tpu_custom_call.1} parent=1 // loop_footer
      %s20 = sadd.s32 1, %s16
    $region7: #{tpu_custom_call.1} parent=1 // loop_footer_branch
      %15 = sbr.rel target = $region3
    $region8: #{tpu_custom_call.1} parent=1 // loop_exit
      _
    %607 = vsyncpa [#allocation3], 1
    %s608 = scalar_lea.sflag [#allocation3], 1
    %609 = vsyncpa %s608, 1
    %610 = vsyncpa [#allocation6], 1
    %611 = vsyncpa [#allocation4], 1
    %s612 = scalar_lea.sflag [#allocation4], 1
    %613 = vsyncpa %s612, 1

</llo_original>
